<compile_context>
chip_gen: v6e
topology: v6e:2x2x1
jax: 0.10.0
libtpu: 0.0.40
codegen_flags: <defaults>
</compile_context>

<pallas_src>
import functools

import jax
import jax.numpy as jnp
from jax import lax
from jax.experimental import pallas as pl
from jax.experimental.pallas import tpu as pltpu

MATMUL_DTYPE = jnp.bfloat16  # MXU-friendly input dtype; accumulation is f32.


def _full_spec(shape):
    # Single grid step, block == full array.
    return pl.BlockSpec(shape, lambda i: (0,) * len(shape))


def _mm(a, b):
    """MXU matmul: bf16 inputs, f32 accumulation."""
    return jnp.dot(a.astype(MATMUL_DTYPE), b.astype(MATMUL_DTYPE),
                   preferred_element_type=jnp.float32)


def _bn_train(x, gamma, beta, reduce_axes):
    """BatchNorm (training mode): batch stats, biased variance, eps=1e-5."""
    mean = x
    for ax in reduce_axes:
        mean = jnp.mean(mean, axis=ax, keepdims=True)
    d = x - mean
    var = d * d
    for ax in reduce_axes:
        var = jnp.mean(var, axis=ax, keepdims=True)
    return d * lax.rsqrt(var + 1e-5) * gamma + beta


# ----------------------------------------------------------------------------
# Fused forward kernel
# ----------------------------------------------------------------------------
def _fused_cnn_kernel(*refs, K, pad, L, conv_len, layer_downsample):
    it = iter(refs)
    x_ref = next(it)
    conv_refs = []
    for ds in layer_downsample:
        n = 6 if ds else 4
        conv_refs.append(tuple(next(it) for _ in range(n)))
    fc1w_ref = next(it); fc1b_ref = next(it)
    fc2w_ref = next(it); fc2b_ref = next(it)
    g1w_ref = next(it); bng_ref = next(it); bnb_ref = next(it)
    g2w_ref = next(it); g2b_ref = next(it)
    feat_ref = next(it); out_ref = next(it)
    pad_buf = next(it)

    B = x_ref.shape[0]
    Hmax = pad_buf.shape[2]
    h = x_ref[...].astype(jnp.float32)            # (B, L, 1)

    # Zero only the 2*pad halo rows, once.  The interior window
    # [:, pad:pad+L, :] is fully overwritten every layer.
    if pad > 0:
        pad_buf[:, :pad, :] = jnp.zeros((B, pad, Hmax), jnp.float32)
        pad_buf[:, pad + L:, :] = jnp.zeros((B, pad, Hmax), jnp.float32)

    # ----- conv stack (conv -> BN(train) -> relu -> trim -> +residual) ------
    for li, prefs in enumerate(conv_refs):
        if layer_downsample[li]:
            w_ref, b_ref, g_ref, bt_ref, dsw_ref, dsb_ref = prefs
        else:
            w_ref, b_ref, g_ref, bt_ref = prefs
            dsw_ref = dsb_ref = None
        cin = w_ref.shape[1]
        cout = w_ref.shape[2]

        if cin == 1:
            # Layer 0: broadcast the single input channel across all output
            # lanes once (lane-dense write), then the conv is K VPU FMAs in
            # f32 -- no MXU push, no width-1 masked stores.
            pad_buf[:, pad:pad + L, :] = jnp.broadcast_to(h, (B, L, Hmax))
            w0 = w_ref[...].astype(jnp.float32)             # (K, 1, cout)
            acc = jnp.zeros((B, conv_len, cout), jnp.float32)
            for k in range(K):
                acc = acc + pad_buf[:, k:k + conv_len, :cout] * w0[k]
        else:
            # K accumulated matmuls on sublane-shifted views (no im2col buf).
            pad_buf[:, pad:pad + L, :cin] = h
            acc = jnp.zeros((B, conv_len, cout), jnp.float32)
            for k in range(K):
                xs = pad_buf[:, k:k + conv_len, :cin].reshape(B * conv_len, cin)
                acc = acc + _mm(xs, w_ref[k]).reshape(B, conv_len, cout)
        acc = acc + b_ref[...]

        # BatchNorm1d (training mode): stats over (batch, length), biased var.
        acc = _bn_train(acc, g_ref[...], bt_ref[...], reduce_axes=(1, 0))

        # Dropout(p=0) is identity; relu; trim back to original length.
        acc = jnp.maximum(acc, 0.0)
        if conv_len != L:
            acc = acc[:, :L, :]

        # Residual path (Linear(cin->cout) only when channel counts differ).
        if layer_downsample[li]:
            if cin == 1:
                ident = h * dsw_ref[...] + dsb_ref[...]     # broadcast, f32 VPU
            else:
                ident = _mm(h.reshape(B * L, cin), dsw_ref[...])
                ident = ident.reshape(B, L, cout) + dsb_ref[...]
        else:
            ident = h
        h = acc + ident                                     # (B, L, cout)

    # ----- relu -> fc1 -> relu (per timestep) --------------------------------
    hid = h.shape[2]
    n1 = fc1w_ref.shape[1]
    y = jnp.maximum(h, 0.0).reshape(B * L, hid)
    y = _mm(y, fc1w_ref[...]) + fc1b_ref[...]
    y = jnp.maximum(y, 0.0).reshape(B, L, n1)               # (B, L, n1)

    # ----- fc2 on torch.flatten(x, 1) -----------------------------------------
    # fc2_w is pre-reshaped in the wrapper to (L, n1, U) so the flatten is
    # absorbed into a sum of L small matmuls (no scatter, no lane-merging
    # reshape).  feats[b,u] = sum_{l,n} y[b,l,n] * W2[l,n,u].
    U = fc2w_ref.shape[2]
    feats = jnp.zeros((B, U), jnp.float32)
    for l in range(L):
        feats = feats + _mm(y[:, l, :], fc2w_ref[l])
    feats = feats + fc2b_ref[...]                           # (B, U)

    # ----- projection head g --------------------------------------------------
    z = _mm(feats, g1w_ref[...])                            # (B, U//4), no bias
    z = _bn_train(z, bng_ref[...], bnb_ref[...], reduce_axes=(0,))
    z = jnp.maximum(z, 0.0)
    out = _mm(z, g2w_ref[...]) + g2b_ref[...]               # (B, F)

    # F.normalize(dim=-1): x / max(||x||, 1e-12) == x * rsqrt(max(||x||^2, 1e-24))
    feat_ref[...] = feats * lax.rsqrt(
        jnp.maximum(jnp.sum(feats * feats, axis=-1, keepdims=True), 1e-24))
    out_ref[...] = out * lax.rsqrt(
        jnp.maximum(jnp.sum(out * out, axis=-1, keepdims=True), 1e-24))


# ----------------------------------------------------------------------------
# Wrapper: single pallas_call for the whole forward pass
# ----------------------------------------------------------------------------
def cnn_forward(x, params, *, kernel_size, num_layers, conv_masking=False):
    # x: (B, L)  ->  torch x.unsqueeze(1) == channels-last (B, L, 1) here
    B, L = x.shape
    K = kernel_size
    pad = (K - 1) if conv_masking else (K // 2)
    conv_len = L + 2 * pad - K + 1
    Lp = L + 2 * pad
    H = params["conv"][0][0].shape[2]              # conv output channels
    n1 = params["fc1_w"].shape[1]                  # fc1 output features (10)
    U = params["fc2_w"].shape[1]                   # num_linear_units
    F = params["g2_w"].shape[1]                    # num_output_feat

    inputs = [x[:, :, None].astype(jnp.float32)]
    in_specs = [_full_spec((B, L, 1))]
    layer_downsample = []
    for i in range(num_layers):
        w, b, gamma, beta, dsw, dsb = params["conv"][i]
        cin = w.shape[1]
        ds = (cin != w.shape[2])
        layer_downsample.append(ds)
        # MXU-bound conv weights go in as bf16; layer-0 (cin==1) stays f32 VPU.
        w_in = w if cin == 1 else w.astype(MATMUL_DTYPE)
        arrays = [w_in, b, gamma, beta]
        if ds:
            dsw_in = dsw if cin == 1 else dsw.astype(MATMUL_DTYPE)
            arrays += [dsw_in, dsb]
        for a in arrays:
            inputs.append(a)
            in_specs.append(_full_spec(a.shape))

    # fc2 weight reshaped to (L, n1, U): matches torch.flatten(x, 1) of the
    # time-major (B, L, n1) activation. All dense weights feeding the MXU: bf16.
    fc2_w = params["fc2_w"].reshape(L, n1, U).astype(MATMUL_DTYPE)
    tail = [
        params["fc1_w"].astype(MATMUL_DTYPE), params["fc1_b"],
        fc2_w, params["fc2_b"],
        params["g1_w"].astype(MATMUL_DTYPE), params["bn_g"], params["bn_b"],
        params["g2_w"].astype(MATMUL_DTYPE), params["g2_b"],
    ]
    for a in tail:
        inputs.append(a)
        in_specs.append(_full_spec(a.shape))

    kern = functools.partial(
        _fused_cnn_kernel, K=K, pad=pad, L=L, conv_len=conv_len,
        layer_downsample=tuple(layer_downsample))

    feats_n, out_n = pl.pallas_call(
        kern,
        grid=(1,),
        out_shape=(jax.ShapeDtypeStruct((B, U), jnp.float32),
                   jax.ShapeDtypeStruct((B, F), jnp.float32)),
        in_specs=in_specs,
        out_specs=(_full_spec((B, U)), _full_spec((B, F))),
        scratch_shapes=[
            pltpu.VMEM((B, Lp, H), jnp.float32),   # padded layer input (only scratch)
        ],
        compiler_params=pltpu.CompilerParams(
            dimension_semantics=("arbitrary",)),
    )(*inputs)
    return feats_n, out_n


def _unif(key, shape, fan_in):
    bound = 1.0 / (fan_in ** 0.5)
    return jax.random.uniform(key, shape, jnp.float32, -bound, bound)


if __name__ == "__main__":
    # Small config: batch=2, max_length=16, hidden=8, kernel=3, 2 conv layers,
    # num_linear_units=8, num_output_feat=16, conv_masking=False.
    B, L, H, K = 2, 16, 8, 3
    NUM_LAYERS, U, OUTF = 2, 8, 16

    root = jax.random.PRNGKey(0)
    ks = jax.random.split(root, 32)

    conv_params = []
    kidx = 0
    for i in range(NUM_LAYERS):
        cin = 1 if i == 0 else H
        w = _unif(ks[kidx], (K, cin, H), cin * K); kidx += 1
        b = _unif(ks[kidx], (1, H), cin * K); kidx += 1
        gamma = jnp.ones((1, H), jnp.float32)
        beta = jnp.zeros((1, H), jnp.float32)
        dsw = _unif(ks[kidx], (cin, H), cin); kidx += 1   # downsample Linear (in,out)
        dsb = _unif(ks[kidx], (1, H), cin); kidx += 1
        conv_params.append((w, b, gamma, beta, dsw, dsb))

    params = {
        "conv": conv_params,
        "fc1_w": _unif(ks[kidx + 0], (H, 10), H),
        "fc1_b": _unif(ks[kidx + 1], (1, 10), H),
        "fc2_w": _unif(ks[kidx + 2], (L * 10, U), L * 10),
        "fc2_b": _unif(ks[kidx + 3], (1, U), L * 10),
        "g1_w": _unif(ks[kidx + 4], (U, U // 4), U),
        "bn_g": jnp.ones((1, U // 4), jnp.float32),
        "bn_b": jnp.zeros((1, U // 4), jnp.float32),
        "g2_w": _unif(ks[kidx + 5], (U // 4, OUTF), U // 4),
        "g2_b": _unif(ks[kidx + 6], (1, OUTF), U // 4),
    }

    x = jax.random.normal(jax.random.PRNGKey(1), (B, L), jnp.float32)

    features_n, output_n = cnn_forward(
        x, params, kernel_size=K, num_layers=NUM_LAYERS, conv_masking=False)
    jax.block_until_ready((features_n, output_n))

    assert features_n.shape == (B, U) and output_n.shape == (B, OUTF)
    assert bool(jnp.all(jnp.isfinite(features_n))) and bool(jnp.all(jnp.isfinite(output_n)))
    print("KERNEL_OK")
</pallas_src>

<mosaic_0001>
module attributes {stable_mosaic.version = 11 : i64} {
  func.func @_fused_cnn_kernel(%arg0: i32, %arg1: memref<2x16x1xf32, #tpu.memory_space<vmem>>, %arg2: memref<3x1x8xf32, #tpu.memory_space<vmem>>, %arg3: memref<1x8xf32, #tpu.memory_space<vmem>>, %arg4: memref<1x8xf32, #tpu.memory_space<vmem>>, %arg5: memref<1x8xf32, #tpu.memory_space<vmem>>, %arg6: memref<1x8xf32, #tpu.memory_space<vmem>>, %arg7: memref<1x8xf32, #tpu.memory_space<vmem>>, %arg8: memref<3x8x8xbf16, #tpu.memory_space<vmem>>, %arg9: memref<1x8xf32, #tpu.memory_space<vmem>>, %arg10: memref<1x8xf32, #tpu.memory_space<vmem>>, %arg11: memref<1x8xf32, #tpu.memory_space<vmem>>, %arg12: memref<8x10xbf16, #tpu.memory_space<vmem>>, %arg13: memref<1x10xf32, #tpu.memory_space<vmem>>, %arg14: memref<16x10x8xbf16, #tpu.memory_space<vmem>>, %arg15: memref<1x8xf32, #tpu.memory_space<vmem>>, %arg16: memref<8x2xbf16, #tpu.memory_space<vmem>>, %arg17: memref<1x2xf32, #tpu.memory_space<vmem>>, %arg18: memref<1x2xf32, #tpu.memory_space<vmem>>, %arg19: memref<2x16xbf16, #tpu.memory_space<vmem>>, %arg20: memref<1x16xf32, #tpu.memory_space<vmem>>, %arg21: memref<2x8xf32, #tpu.memory_space<vmem>>, %arg22: memref<2x16xf32, #tpu.memory_space<vmem>>, %arg23: memref<2x18x8xf32, #tpu.memory_space<vmem>>) attributes {dimension_semantics = [#tpu.dimension_semantics<arbitrary>], iteration_bounds = array<i64: 1>, scalar_prefetch = 0 : i64, scratch_operands = 1 : i64, tpu.core_type = #tpu.core_type<tc>, window_params = [{pipeline_mode = #tpu.pipeline_mode<synchronous>, transform_indices = @transform_0, window_bounds = array<i64: 2, 16, 1>}, {pipeline_mode = #tpu.pipeline_mode<synchronous>, transform_indices = @transform_1, window_bounds = array<i64: 3, 1, 8>}, {pipeline_mode = #tpu.pipeline_mode<synchronous>, transform_indices = @transform_2, window_bounds = array<i64: 1, 8>}, {pipeline_mode = #tpu.pipeline_mode<synchronous>, transform_indices = @transform_3, window_bounds = array<i64: 1, 8>}, {pipeline_mode = #tpu.pipeline_mode<synchronous>, transform_indices = @transform_4, window_bounds = array<i64: 1, 8>}, {pipeline_mode = #tpu.pipeline_mode<synchronous>, transform_indices = @transform_5, window_bounds = array<i64: 1, 8>}, {pipeline_mode = #tpu.pipeline_mode<synchronous>, transform_indices = @transform_6, window_bounds = array<i64: 1, 8>}, {pipeline_mode = #tpu.pipeline_mode<synchronous>, transform_indices = @transform_7, window_bounds = array<i64: 3, 8, 8>}, {pipeline_mode = #tpu.pipeline_mode<synchronous>, transform_indices = @transform_8, window_bounds = array<i64: 1, 8>}, {pipeline_mode = #tpu.pipeline_mode<synchronous>, transform_indices = @transform_9, window_bounds = array<i64: 1, 8>}, {pipeline_mode = #tpu.pipeline_mode<synchronous>, transform_indices = @transform_10, window_bounds = array<i64: 1, 8>}, {pipeline_mode = #tpu.pipeline_mode<synchronous>, transform_indices = @transform_11, window_bounds = array<i64: 8, 10>}, {pipeline_mode = #tpu.pipeline_mode<synchronous>, transform_indices = @transform_12, window_bounds = array<i64: 1, 10>}, {pipeline_mode = #tpu.pipeline_mode<synchronous>, transform_indices = @transform_13, window_bounds = array<i64: 16, 10, 8>}, {pipeline_mode = #tpu.pipeline_mode<synchronous>, transform_indices = @transform_14, window_bounds = array<i64: 1, 8>}, {pipeline_mode = #tpu.pipeline_mode<synchronous>, transform_indices = @transform_15, window_bounds = array<i64: 8, 2>}, {pipeline_mode = #tpu.pipeline_mode<synchronous>, transform_indices = @transform_16, window_bounds = array<i64: 1, 2>}, {pipeline_mode = #tpu.pipeline_mode<synchronous>, transform_indices = @transform_17, window_bounds = array<i64: 1, 2>}, {pipeline_mode = #tpu.pipeline_mode<synchronous>, transform_indices = @transform_18, window_bounds = array<i64: 2, 16>}, {pipeline_mode = #tpu.pipeline_mode<synchronous>, transform_indices = @transform_19, window_bounds = array<i64: 1, 16>}, {pipeline_mode = #tpu.pipeline_mode<synchronous>, transform_indices = @transform_20, window_bounds = array<i64: 2, 8>}, {pipeline_mode = #tpu.pipeline_mode<synchronous>, transform_indices = @transform_21, window_bounds = array<i64: 2, 16>}]} {
    %c0 = arith.constant 0 : index
    %c0_0 = arith.constant 0 : index
    %c0_1 = arith.constant 0 : index
    %0 = vector.load %arg1[%c0, %c0_0, %c0_1] : memref<2x16x1xf32, #tpu.memory_space<vmem>>, vector<2x16x1xf32>
    %cst = arith.constant 0.000000e+00 : f32
    %1 = vector.broadcast %cst : f32 to vector<2x1x8xf32>
    %c0_2 = arith.constant 0 : index
    %c0_3 = arith.constant 0 : index
    %c0_4 = arith.constant 0 : index
    %2 = vector.load %arg23[%c0_2, %c0_3, %c0_4] : memref<2x18x8xf32, #tpu.memory_space<vmem>>, vector<2x1x8xf32>
    tpu.vector_store %arg23[%c0_2, %c0_3, %c0_4], %1 {strides = array<i32>} : memref<2x18x8xf32, #tpu.memory_space<vmem>>, vector<2x1x8xf32>,
    %cst_5 = arith.constant 0.000000e+00 : f32
    %3 = vector.broadcast %cst_5 : f32 to vector<2x1x8xf32>
    %c0_6 = arith.constant 0 : index
    %c17 = arith.constant 17 : index
    %c0_7 = arith.constant 0 : index
    %4 = vector.load %arg23[%c0_6, %c17, %c0_7] : memref<2x18x8xf32, #tpu.memory_space<vmem>>, vector<2x1x8xf32>
    tpu.vector_store %arg23[%c0_6, %c17, %c0_7], %3 {strides = array<i32>} : memref<2x18x8xf32, #tpu.memory_space<vmem>>, vector<2x1x8xf32>,
    %5 = vector.shape_cast %0 : vector<2x16x1xf32> to vector<2x16x1xf32>
    %6 = vector.broadcast %5 : vector<2x16x1xf32> to vector<2x16x8xf32>
    %c0_8 = arith.constant 0 : index
    %c1 = arith.constant 1 : index
    %c0_9 = arith.constant 0 : index
    %7 = vector.load %arg23[%c0_8, %c1, %c0_9] : memref<2x18x8xf32, #tpu.memory_space<vmem>>, vector<2x16x8xf32>
    tpu.vector_store %arg23[%c0_8, %c1, %c0_9], %6 {strides = array<i32>} : memref<2x18x8xf32, #tpu.memory_space<vmem>>, vector<2x16x8xf32>,
    %c0_10 = arith.constant 0 : index
    %c0_11 = arith.constant 0 : index
    %c0_12 = arith.constant 0 : index
    %8 = vector.load %arg2[%c0_10, %c0_11, %c0_12] : memref<3x1x8xf32, #tpu.memory_space<vmem>>, vector<3x1x8xf32>
    %cst_13 = arith.constant 0.000000e+00 : f32
    %9 = vector.broadcast %cst_13 : f32 to vector<2x16x8xf32>
    %c0_14 = arith.constant 0 : index
    %c0_15 = arith.constant 0 : index
    %c0_16 = arith.constant 0 : index
    %10 = vector.load %arg23[%c0_14, %c0_15, %c0_16] : memref<2x18x8xf32, #tpu.memory_space<vmem>>, vector<2x16x8xf32>
    %11 = vector.extract_strided_slice %8 {offsets = [0, 0, 0], sizes = [1, 1, 8], strides = [1, 1, 1]} : vector<3x1x8xf32> to vector<1x1x8xf32>
    %12 = vector.shape_cast %11 : vector<1x1x8xf32> to vector<1x8xf32>
    %13 = vector.shape_cast %12 : vector<1x8xf32> to vector<1x1x8xf32>
    %14 = vector.broadcast %13 : vector<1x1x8xf32> to vector<2x16x8xf32>
    %15 = arith.mulf %10, %14 : vector<2x16x8xf32>
    %16 = arith.addf %9, %15 : vector<2x16x8xf32>
    %c0_17 = arith.constant 0 : index
    %c1_18 = arith.constant 1 : index
    %c0_19 = arith.constant 0 : index
    %17 = vector.load %arg23[%c0_17, %c1_18, %c0_19] : memref<2x18x8xf32, #tpu.memory_space<vmem>>, vector<2x16x8xf32>
    %18 = vector.extract_strided_slice %8 {offsets = [1, 0, 0], sizes = [1, 1, 8], strides = [1, 1, 1]} : vector<3x1x8xf32> to vector<1x1x8xf32>
    %19 = vector.shape_cast %18 : vector<1x1x8xf32> to vector<1x8xf32>
    %20 = vector.shape_cast %19 : vector<1x8xf32> to vector<1x1x8xf32>
    %21 = vector.broadcast %20 : vector<1x1x8xf32> to vector<2x16x8xf32>
    %22 = arith.mulf %17, %21 : vector<2x16x8xf32>
    %23 = arith.addf %16, %22 : vector<2x16x8xf32>
    %c0_20 = arith.constant 0 : index
    %c2 = arith.constant 2 : index
    %c0_21 = arith.constant 0 : index
    %24 = vector.load %arg23[%c0_20, %c2, %c0_21] : memref<2x18x8xf32, #tpu.memory_space<vmem>>, vector<2x16x8xf32>
    %25 = vector.extract_strided_slice %8 {offsets = [2, 0, 0], sizes = [1, 1, 8], strides = [1, 1, 1]} : vector<3x1x8xf32> to vector<1x1x8xf32>
    %26 = vector.shape_cast %25 : vector<1x1x8xf32> to vector<1x8xf32>
    %27 = vector.shape_cast %26 : vector<1x8xf32> to vector<1x1x8xf32>
    %28 = vector.broadcast %27 : vector<1x1x8xf32> to vector<2x16x8xf32>
    %29 = arith.mulf %24, %28 : vector<2x16x8xf32>
    %30 = arith.addf %23, %29 : vector<2x16x8xf32>
    %c0_22 = arith.constant 0 : index
    %c0_23 = arith.constant 0 : index
    %31 = vector.load %arg3[%c0_22, %c0_23] : memref<1x8xf32, #tpu.memory_space<vmem>>, vector<1x8xf32>
    %32 = vector.shape_cast %31 : vector<1x8xf32> to vector<1x1x8xf32>
    %33 = vector.broadcast %32 : vector<1x1x8xf32> to vector<2x16x8xf32>
    %34 = arith.addf %30, %33 : vector<2x16x8xf32>
    %c0_24 = arith.constant 0 : index
    %c0_25 = arith.constant 0 : index
    %35 = vector.load %arg4[%c0_24, %c0_25] : memref<1x8xf32, #tpu.memory_space<vmem>>, vector<1x8xf32>
    %c0_26 = arith.constant 0 : index
    %c0_27 = arith.constant 0 : index
    %36 = vector.load %arg5[%c0_26, %c0_27] : memref<1x8xf32, #tpu.memory_space<vmem>>, vector<1x8xf32>
    %cst_28 = arith.constant dense<0.000000e+00> : vector<2x8xf32>
    %37 = vector.multi_reduction <add>, %34, %cst_28 [1] : vector<2x16x8xf32> to vector<2x8xf32>
    %38 = vector.shape_cast %37 : vector<2x8xf32> to vector<2x1x8xf32>
    %cst_29 = arith.constant 1.600000e+01 : f32
    %39 = vector.broadcast %cst_29 : f32 to vector<2x1x8xf32>
    %40 = arith.divf %38, %39 : vector<2x1x8xf32>
    %cst_30 = arith.constant dense<0.000000e+00> : vector<1x8xf32>
    %41 = vector.multi_reduction <add>, %40, %cst_30 [0] : vector<2x1x8xf32> to vector<1x8xf32>
    %42 = vector.shape_cast %41 : vector<1x8xf32> to vector<1x1x8xf32>
    %cst_31 = arith.constant 2.000000e+00 : f32
    %43 = vector.broadcast %cst_31 : f32 to vector<1x1x8xf32>
    %44 = arith.divf %42, %43 : vector<1x1x8xf32>
    %45 = vector.broadcast %44 : vector<1x1x8xf32> to vector<2x16x8xf32>
    %46 = arith.subf %34, %45 : vector<2x16x8xf32>
    %47 = arith.mulf %46, %46 : vector<2x16x8xf32>
    %cst_32 = arith.constant dense<0.000000e+00> : vector<2x8xf32>
    %48 = vector.multi_reduction <add>, %47, %cst_32 [1] : vector<2x16x8xf32> to vector<2x8xf32>
    %49 = vector.shape_cast %48 : vector<2x8xf32> to vector<2x1x8xf32>
    %cst_33 = arith.constant 1.600000e+01 : f32
    %50 = vector.broadcast %cst_33 : f32 to vector<2x1x8xf32>
    %51 = arith.divf %49, %50 : vector<2x1x8xf32>
    %cst_34 = arith.constant dense<0.000000e+00> : vector<1x8xf32>
    %52 = vector.multi_reduction <add>, %51, %cst_34 [0] : vector<2x1x8xf32> to vector<1x8xf32>
    %53 = vector.shape_cast %52 : vector<1x8xf32> to vector<1x1x8xf32>
    %cst_35 = arith.constant 2.000000e+00 : f32
    %54 = vector.broadcast %cst_35 : f32 to vector<1x1x8xf32>
    %55 = arith.divf %53, %54 : vector<1x1x8xf32>
    %cst_36 = arith.constant 9.99999974E-6 : f32
    %56 = vector.broadcast %cst_36 : f32 to vector<1x1x8xf32>
    %57 = arith.addf %55, %56 : vector<1x1x8xf32>
    %58 = math.rsqrt %57 : vector<1x1x8xf32>
    %59 = vector.broadcast %58 : vector<1x1x8xf32> to vector<2x16x8xf32>
    %60 = arith.mulf %46, %59 : vector<2x16x8xf32>
    %61 = vector.shape_cast %35 : vector<1x8xf32> to vector<1x1x8xf32>
    %62 = vector.broadcast %61 : vector<1x1x8xf32> to vector<2x16x8xf32>
    %63 = arith.mulf %60, %62 : vector<2x16x8xf32>
    %64 = vector.shape_cast %36 : vector<1x8xf32> to vector<1x1x8xf32>
    %65 = vector.broadcast %64 : vector<1x1x8xf32> to vector<2x16x8xf32>
    %66 = arith.addf %63, %65 : vector<2x16x8xf32>
    %cst_37 = arith.constant 0.000000e+00 : f32
    %67 = vector.broadcast %cst_37 : f32 to vector<2x16x8xf32>
    %68 = arith.maximumf %66, %67 : vector<2x16x8xf32>
    %c0_38 = arith.constant 0 : index
    %c0_39 = arith.constant 0 : index
    %69 = vector.load %arg6[%c0_38, %c0_39] : memref<1x8xf32, #tpu.memory_space<vmem>>, vector<1x8xf32>
    %70 = vector.shape_cast %69 : vector<1x8xf32> to vector<1x1x8xf32>
    %71 = vector.broadcast %0 : vector<2x16x1xf32> to vector<2x16x8xf32>
    %72 = vector.broadcast %70 : vector<1x1x8xf32> to vector<2x16x8xf32>
    %73 = arith.mulf %71, %72 : vector<2x16x8xf32>
    %c0_40 = arith.constant 0 : index
    %c0_41 = arith.constant 0 : index
    %74 = vector.load %arg7[%c0_40, %c0_41] : memref<1x8xf32, #tpu.memory_space<vmem>>, vector<1x8xf32>
    %75 = vector.shape_cast %74 : vector<1x8xf32> to vector<1x1x8xf32>
    %76 = vector.broadcast %75 : vector<1x1x8xf32> to vector<2x16x8xf32>
    %77 = arith.addf %73, %76 : vector<2x16x8xf32>
    %78 = arith.addf %68, %77 : vector<2x16x8xf32>
    %c0_42 = arith.constant 0 : index
    %c1_43 = arith.constant 1 : index
    %c0_44 = arith.constant 0 : index
    %79 = vector.load %arg23[%c0_42, %c1_43, %c0_44] : memref<2x18x8xf32, #tpu.memory_space<vmem>>, vector<2x16x8xf32>
    tpu.vector_store %arg23[%c0_42, %c1_43, %c0_44], %78 {strides = array<i32>} : memref<2x18x8xf32, #tpu.memory_space<vmem>>, vector<2x16x8xf32>,
    %cst_45 = arith.constant 0.000000e+00 : f32
    %80 = vector.broadcast %cst_45 : f32 to vector<2x16x8xf32>
    %c0_46 = arith.constant 0 : index
    %c0_47 = arith.constant 0 : index
    %c0_48 = arith.constant 0 : index
    %81 = vector.load %arg23[%c0_46, %c0_47, %c0_48] : memref<2x18x8xf32, #tpu.memory_space<vmem>>, vector<2x16x8xf32>
    %82 = vector.shape_cast %81 : vector<2x16x8xf32> to vector<32x8xf32>
    %c0_49 = arith.constant 0 : index
    %c0_50 = arith.constant 0 : index
    %c0_51 = arith.constant 0 : index
    %83 = vector.load %arg8[%c0_49, %c0_50, %c0_51] : memref<3x8x8xbf16, #tpu.memory_space<vmem>>, vector<1x8x8xbf16>
    %84 = vector.shape_cast %83 : vector<1x8x8xbf16> to vector<8x8xbf16>
    %85 = arith.truncf %82 : vector<32x8xf32> to vector<32x8xbf16>
    %cst_52 = arith.constant dense<0.000000e+00> : vector<32x8xf32>
    %86 = tpu.matmul %85, %84, %cst_52 {dimension_numbers = #tpu.dot_dimension_numbers<[1], [0], [0], [1], [0, 0, 1, 1], [], []>} : vector<32x8xbf16>, vector<8x8xbf16>, vector<32x8xf32> -> vector<32x8xf32>
    %87 = vector.shape_cast %86 : vector<32x8xf32> to vector<2x16x8xf32>
    %88 = arith.addf %80, %87 : vector<2x16x8xf32>
    %c0_53 = arith.constant 0 : index
    %c1_54 = arith.constant 1 : index
    %c0_55 = arith.constant 0 : index
    %89 = vector.load %arg23[%c0_53, %c1_54, %c0_55] : memref<2x18x8xf32, #tpu.memory_space<vmem>>, vector<2x16x8xf32>
    %90 = vector.shape_cast %89 : vector<2x16x8xf32> to vector<32x8xf32>
    %c1_56 = arith.constant 1 : index
    %c0_57 = arith.constant 0 : index
    %c0_58 = arith.constant 0 : index
    %91 = vector.load %arg8[%c1_56, %c0_57, %c0_58] : memref<3x8x8xbf16, #tpu.memory_space<vmem>>, vector<1x8x8xbf16>
    %92 = vector.shape_cast %91 : vector<1x8x8xbf16> to vector<8x8xbf16>
    %93 = arith.truncf %90 : vector<32x8xf32> to vector<32x8xbf16>
    %cst_59 = arith.constant dense<0.000000e+00> : vector<32x8xf32>
    %94 = tpu.matmul %93, %92, %cst_59 {dimension_numbers = #tpu.dot_dimension_numbers<[1], [0], [0], [1], [0, 0, 1, 1], [], []>} : vector<32x8xbf16>, vector<8x8xbf16>, vector<32x8xf32> -> vector<32x8xf32>
    %95 = vector.shape_cast %94 : vector<32x8xf32> to vector<2x16x8xf32>
    %96 = arith.addf %88, %95 : vector<2x16x8xf32>
    %c0_60 = arith.constant 0 : index
    %c2_61 = arith.constant 2 : index
    %c0_62 = arith.constant 0 : index
    %97 = vector.load %arg23[%c0_60, %c2_61, %c0_62] : memref<2x18x8xf32, #tpu.memory_space<vmem>>, vector<2x16x8xf32>
    %98 = vector.shape_cast %97 : vector<2x16x8xf32> to vector<32x8xf32>
    %c2_63 = arith.constant 2 : index
    %c0_64 = arith.constant 0 : index
    %c0_65 = arith.constant 0 : index
    %99 = vector.load %arg8[%c2_63, %c0_64, %c0_65] : memref<3x8x8xbf16, #tpu.memory_space<vmem>>, vector<1x8x8xbf16>
    %100 = vector.shape_cast %99 : vector<1x8x8xbf16> to vector<8x8xbf16>
    %101 = arith.truncf %98 : vector<32x8xf32> to vector<32x8xbf16>
    %cst_66 = arith.constant dense<0.000000e+00> : vector<32x8xf32>
    %102 = tpu.matmul %101, %100, %cst_66 {dimension_numbers = #tpu.dot_dimension_numbers<[1], [0], [0], [1], [0, 0, 1, 1], [], []>} : vector<32x8xbf16>, vector<8x8xbf16>, vector<32x8xf32> -> vector<32x8xf32>
    %103 = vector.shape_cast %102 : vector<32x8xf32> to vector<2x16x8xf32>
    %104 = arith.addf %96, %103 : vector<2x16x8xf32>
    %c0_67 = arith.constant 0 : index
    %c0_68 = arith.constant 0 : index
    %105 = vector.load %arg9[%c0_67, %c0_68] : memref<1x8xf32, #tpu.memory_space<vmem>>, vector<1x8xf32>
    %106 = vector.shape_cast %105 : vector<1x8xf32> to vector<1x1x8xf32>
    %107 = vector.broadcast %106 : vector<1x1x8xf32> to vector<2x16x8xf32>
    %108 = arith.addf %104, %107 : vector<2x16x8xf32>
    %c0_69 = arith.constant 0 : index
    %c0_70 = arith.constant 0 : index
    %109 = vector.load %arg10[%c0_69, %c0_70] : memref<1x8xf32, #tpu.memory_space<vmem>>, vector<1x8xf32>
    %c0_71 = arith.constant 0 : index
    %c0_72 = arith.constant 0 : index
    %110 = vector.load %arg11[%c0_71, %c0_72] : memref<1x8xf32, #tpu.memory_space<vmem>>, vector<1x8xf32>
    %cst_73 = arith.constant dense<0.000000e+00> : vector<2x8xf32>
    %111 = vector.multi_reduction <add>, %108, %cst_73 [1] : vector<2x16x8xf32> to vector<2x8xf32>
    %112 = vector.shape_cast %111 : vector<2x8xf32> to vector<2x1x8xf32>
    %cst_74 = arith.constant 1.600000e+01 : f32
    %113 = vector.broadcast %cst_74 : f32 to vector<2x1x8xf32>
    %114 = arith.divf %112, %113 : vector<2x1x8xf32>
    %cst_75 = arith.constant dense<0.000000e+00> : vector<1x8xf32>
    %115 = vector.multi_reduction <add>, %114, %cst_75 [0] : vector<2x1x8xf32> to vector<1x8xf32>
    %116 = vector.shape_cast %115 : vector<1x8xf32> to vector<1x1x8xf32>
    %cst_76 = arith.constant 2.000000e+00 : f32
    %117 = vector.broadcast %cst_76 : f32 to vector<1x1x8xf32>
    %118 = arith.divf %116, %117 : vector<1x1x8xf32>
    %119 = vector.broadcast %118 : vector<1x1x8xf32> to vector<2x16x8xf32>
    %120 = arith.subf %108, %119 : vector<2x16x8xf32>
    %121 = arith.mulf %120, %120 : vector<2x16x8xf32>
    %cst_77 = arith.constant dense<0.000000e+00> : vector<2x8xf32>
    %122 = vector.multi_reduction <add>, %121, %cst_77 [1] : vector<2x16x8xf32> to vector<2x8xf32>
    %123 = vector.shape_cast %122 : vector<2x8xf32> to vector<2x1x8xf32>
    %cst_78 = arith.constant 1.600000e+01 : f32
    %124 = vector.broadcast %cst_78 : f32 to vector<2x1x8xf32>
    %125 = arith.divf %123, %124 : vector<2x1x8xf32>
    %cst_79 = arith.constant dense<0.000000e+00> : vector<1x8xf32>
    %126 = vector.multi_reduction <add>, %125, %cst_79 [0] : vector<2x1x8xf32> to vector<1x8xf32>
    %127 = vector.shape_cast %126 : vector<1x8xf32> to vector<1x1x8xf32>
    %cst_80 = arith.constant 2.000000e+00 : f32
    %128 = vector.broadcast %cst_80 : f32 to vector<1x1x8xf32>
    %129 = arith.divf %127, %128 : vector<1x1x8xf32>
    %cst_81 = arith.constant 9.99999974E-6 : f32
    %130 = vector.broadcast %cst_81 : f32 to vector<1x1x8xf32>
    %131 = arith.addf %129, %130 : vector<1x1x8xf32>
    %132 = math.rsqrt %131 : vector<1x1x8xf32>
    %133 = vector.broadcast %132 : vector<1x1x8xf32> to vector<2x16x8xf32>
    %134 = arith.mulf %120, %133 : vector<2x16x8xf32>
    %135 = vector.shape_cast %109 : vector<1x8xf32> to vector<1x1x8xf32>
    %136 = vector.broadcast %135 : vector<1x1x8xf32> to vector<2x16x8xf32>
    %137 = arith.mulf %134, %136 : vector<2x16x8xf32>
    %138 = vector.shape_cast %110 : vector<1x8xf32> to vector<1x1x8xf32>
    %139 = vector.broadcast %138 : vector<1x1x8xf32> to vector<2x16x8xf32>
    %140 = arith.addf %137, %139 : vector<2x16x8xf32>
    %cst_82 = arith.constant 0.000000e+00 : f32
    %141 = vector.broadcast %cst_82 : f32 to vector<2x16x8xf32>
    %142 = arith.maximumf %140, %141 : vector<2x16x8xf32>
    %143 = arith.addf %142, %78 : vector<2x16x8xf32>
    %cst_83 = arith.constant 0.000000e+00 : f32
    %144 = vector.broadcast %cst_83 : f32 to vector<2x16x8xf32>
    %145 = arith.maximumf %143, %144 : vector<2x16x8xf32>
    %146 = vector.shape_cast %145 : vector<2x16x8xf32> to vector<32x8xf32>
    %c0_84 = arith.constant 0 : index
    %c0_85 = arith.constant 0 : index
    %147 = vector.load %arg12[%c0_84, %c0_85] : memref<8x10xbf16, #tpu.memory_space<vmem>>, vector<8x10xbf16>
    %148 = arith.truncf %146 : vector<32x8xf32> to vector<32x8xbf16>
    %cst_86 = arith.constant dense<0.000000e+00> : vector<32x10xf32>
    %149 = tpu.matmul %148, %147, %cst_86 {dimension_numbers = #tpu.dot_dimension_numbers<[1], [0], [0], [1], [0, 0, 1, 1], [], []>} : vector<32x8xbf16>, vector<8x10xbf16>, vector<32x10xf32> -> vector<32x10xf32>
    %c0_87 = arith.constant 0 : index
    %c0_88 = arith.constant 0 : index
    %150 = vector.load %arg13[%c0_87, %c0_88] : memref<1x10xf32, #tpu.memory_space<vmem>>, vector<1x10xf32>
    %151 = vector.broadcast %150 : vector<1x10xf32> to vector<32x10xf32>
    %152 = arith.addf %149, %151 : vector<32x10xf32>
    %cst_89 = arith.constant 0.000000e+00 : f32
    %153 = vector.broadcast %cst_89 : f32 to vector<32x10xf32>
    %154 = arith.maximumf %152, %153 : vector<32x10xf32>
    %155 = vector.shape_cast %154 : vector<32x10xf32> to vector<2x16x10xf32>
    %cst_90 = arith.constant 0.000000e+00 : f32
    %156 = vector.broadcast %cst_90 : f32 to vector<2x8xf32>
    %157 = vector.extract_strided_slice %155 {offsets = [0, 0, 0], sizes = [2, 1, 10], strides = [1, 1, 1]} : vector<2x16x10xf32> to vector<2x1x10xf32>
    %158 = vector.shape_cast %157 : vector<2x1x10xf32> to vector<2x10xf32>
    %c0_91 = arith.constant 0 : index
    %c0_92 = arith.constant 0 : index
    %c0_93 = arith.constant 0 : index
    %159 = vector.load %arg14[%c0_91, %c0_92, %c0_93] : memref<16x10x8xbf16, #tpu.memory_space<vmem>>, vector<1x10x8xbf16>
    %160 = vector.shape_cast %159 : vector<1x10x8xbf16> to vector<10x8xbf16>
    %161 = arith.truncf %158 : vector<2x10xf32> to vector<2x10xbf16>
    %cst_94 = arith.constant dense<0.000000e+00> : vector<2x8xf32>
    %162 = tpu.matmul %161, %160, %cst_94 {dimension_numbers = #tpu.dot_dimension_numbers<[1], [0], [0], [1], [0, 0, 1, 1], [], []>} : vector<2x10xbf16>, vector<10x8xbf16>, vector<2x8xf32> -> vector<2x8xf32>
    %163 = arith.addf %156, %162 : vector<2x8xf32>
    %164 = vector.extract_strided_slice %155 {offsets = [0, 1, 0], sizes = [2, 1, 10], strides = [1, 1, 1]} : vector<2x16x10xf32> to vector<2x1x10xf32>
    %165 = vector.shape_cast %164 : vector<2x1x10xf32> to vector<2x10xf32>
    %c1_95 = arith.constant 1 : index
    %c0_96 = arith.constant 0 : index
    %c0_97 = arith.constant 0 : index
    %166 = vector.load %arg14[%c1_95, %c0_96, %c0_97] : memref<16x10x8xbf16, #tpu.memory_space<vmem>>, vector<1x10x8xbf16>
    %167 = vector.shape_cast %166 : vector<1x10x8xbf16> to vector<10x8xbf16>
    %168 = arith.truncf %165 : vector<2x10xf32> to vector<2x10xbf16>
    %cst_98 = arith.constant dense<0.000000e+00> : vector<2x8xf32>
    %169 = tpu.matmul %168, %167, %cst_98 {dimension_numbers = #tpu.dot_dimension_numbers<[1], [0], [0], [1], [0, 0, 1, 1], [], []>} : vector<2x10xbf16>, vector<10x8xbf16>, vector<2x8xf32> -> vector<2x8xf32>
    %170 = arith.addf %163, %169 : vector<2x8xf32>
    %171 = vector.extract_strided_slice %155 {offsets = [0, 2, 0], sizes = [2, 1, 10], strides = [1, 1, 1]} : vector<2x16x10xf32> to vector<2x1x10xf32>
    %172 = vector.shape_cast %171 : vector<2x1x10xf32> to vector<2x10xf32>
    %c2_99 = arith.constant 2 : index
    %c0_100 = arith.constant 0 : index
    %c0_101 = arith.constant 0 : index
    %173 = vector.load %arg14[%c2_99, %c0_100, %c0_101] : memref<16x10x8xbf16, #tpu.memory_space<vmem>>, vector<1x10x8xbf16>
    %174 = vector.shape_cast %173 : vector<1x10x8xbf16> to vector<10x8xbf16>
    %175 = arith.truncf %172 : vector<2x10xf32> to vector<2x10xbf16>
    %cst_102 = arith.constant dense<0.000000e+00> : vector<2x8xf32>
    %176 = tpu.matmul %175, %174, %cst_102 {dimension_numbers = #tpu.dot_dimension_numbers<[1], [0], [0], [1], [0, 0, 1, 1], [], []>} : vector<2x10xbf16>, vector<10x8xbf16>, vector<2x8xf32> -> vector<2x8xf32>
    %177 = arith.addf %170, %176 : vector<2x8xf32>
    %178 = vector.extract_strided_slice %155 {offsets = [0, 3, 0], sizes = [2, 1, 10], strides = [1, 1, 1]} : vector<2x16x10xf32> to vector<2x1x10xf32>
    %179 = vector.shape_cast %178 : vector<2x1x10xf32> to vector<2x10xf32>
    %c3 = arith.constant 3 : index
    %c0_103 = arith.constant 0 : index
    %c0_104 = arith.constant 0 : index
    %180 = vector.load %arg14[%c3, %c0_103, %c0_104] : memref<16x10x8xbf16, #tpu.memory_space<vmem>>, vector<1x10x8xbf16>
    %181 = vector.shape_cast %180 : vector<1x10x8xbf16> to vector<10x8xbf16>
    %182 = arith.truncf %179 : vector<2x10xf32> to vector<2x10xbf16>
    %cst_105 = arith.constant dense<0.000000e+00> : vector<2x8xf32>
    %183 = tpu.matmul %182, %181, %cst_105 {dimension_numbers = #tpu.dot_dimension_numbers<[1], [0], [0], [1], [0, 0, 1, 1], [], []>} : vector<2x10xbf16>, vector<10x8xbf16>, vector<2x8xf32> -> vector<2x8xf32>
    %184 = arith.addf %177, %183 : vector<2x8xf32>
    %185 = vector.extract_strided_slice %155 {offsets = [0, 4, 0], sizes = [2, 1, 10], strides = [1, 1, 1]} : vector<2x16x10xf32> to vector<2x1x10xf32>
    %186 = vector.shape_cast %185 : vector<2x1x10xf32> to vector<2x10xf32>
    %c4 = arith.constant 4 : index
    %c0_106 = arith.constant 0 : index
    %c0_107 = arith.constant 0 : index
    %187 = vector.load %arg14[%c4, %c0_106, %c0_107] : memref<16x10x8xbf16, #tpu.memory_space<vmem>>, vector<1x10x8xbf16>
    %188 = vector.shape_cast %187 : vector<1x10x8xbf16> to vector<10x8xbf16>
    %189 = arith.truncf %186 : vector<2x10xf32> to vector<2x10xbf16>
    %cst_108 = arith.constant dense<0.000000e+00> : vector<2x8xf32>
    %190 = tpu.matmul %189, %188, %cst_108 {dimension_numbers = #tpu.dot_dimension_numbers<[1], [0], [0], [1], [0, 0, 1, 1], [], []>} : vector<2x10xbf16>, vector<10x8xbf16>, vector<2x8xf32> -> vector<2x8xf32>
    %191 = arith.addf %184, %190 : vector<2x8xf32>
    %192 = vector.extract_strided_slice %155 {offsets = [0, 5, 0], sizes = [2, 1, 10], strides = [1, 1, 1]} : vector<2x16x10xf32> to vector<2x1x10xf32>
    %193 = vector.shape_cast %192 : vector<2x1x10xf32> to vector<2x10xf32>
    %c5 = arith.constant 5 : index
    %c0_109 = arith.constant 0 : index
    %c0_110 = arith.constant 0 : index
    %194 = vector.load %arg14[%c5, %c0_109, %c0_110] : memref<16x10x8xbf16, #tpu.memory_space<vmem>>, vector<1x10x8xbf16>
    %195 = vector.shape_cast %194 : vector<1x10x8xbf16> to vector<10x8xbf16>
    %196 = arith.truncf %193 : vector<2x10xf32> to vector<2x10xbf16>
    %cst_111 = arith.constant dense<0.000000e+00> : vector<2x8xf32>
    %197 = tpu.matmul %196, %195, %cst_111 {dimension_numbers = #tpu.dot_dimension_numbers<[1], [0], [0], [1], [0, 0, 1, 1], [], []>} : vector<2x10xbf16>, vector<10x8xbf16>, vector<2x8xf32> -> vector<2x8xf32>
    %198 = arith.addf %191, %197 : vector<2x8xf32>
    %199 = vector.extract_strided_slice %155 {offsets = [0, 6, 0], sizes = [2, 1, 10], strides = [1, 1, 1]} : vector<2x16x10xf32> to vector<2x1x10xf32>
    %200 = vector.shape_cast %199 : vector<2x1x10xf32> to vector<2x10xf32>
    %c6 = arith.constant 6 : index
    %c0_112 = arith.constant 0 : index
    %c0_113 = arith.constant 0 : index
    %201 = vector.load %arg14[%c6, %c0_112, %c0_113] : memref<16x10x8xbf16, #tpu.memory_space<vmem>>, vector<1x10x8xbf16>
    %202 = vector.shape_cast %201 : vector<1x10x8xbf16> to vector<10x8xbf16>
    %203 = arith.truncf %200 : vector<2x10xf32> to vector<2x10xbf16>
    %cst_114 = arith.constant dense<0.000000e+00> : vector<2x8xf32>
    %204 = tpu.matmul %203, %202, %cst_114 {dimension_numbers = #tpu.dot_dimension_numbers<[1], [0], [0], [1], [0, 0, 1, 1], [], []>} : vector<2x10xbf16>, vector<10x8xbf16>, vector<2x8xf32> -> vector<2x8xf32>
    %205 = arith.addf %198, %204 : vector<2x8xf32>
    %206 = vector.extract_strided_slice %155 {offsets = [0, 7, 0], sizes = [2, 1, 10], strides = [1, 1, 1]} : vector<2x16x10xf32> to vector<2x1x10xf32>
    %207 = vector.shape_cast %206 : vector<2x1x10xf32> to vector<2x10xf32>
    %c7 = arith.constant 7 : index
    %c0_115 = arith.constant 0 : index
    %c0_116 = arith.constant 0 : index
    %208 = vector.load %arg14[%c7, %c0_115, %c0_116] : memref<16x10x8xbf16, #tpu.memory_space<vmem>>, vector<1x10x8xbf16>
    %209 = vector.shape_cast %208 : vector<1x10x8xbf16> to vector<10x8xbf16>
    %210 = arith.truncf %207 : vector<2x10xf32> to vector<2x10xbf16>
    %cst_117 = arith.constant dense<0.000000e+00> : vector<2x8xf32>
    %211 = tpu.matmul %210, %209, %cst_117 {dimension_numbers = #tpu.dot_dimension_numbers<[1], [0], [0], [1], [0, 0, 1, 1], [], []>} : vector<2x10xbf16>, vector<10x8xbf16>, vector<2x8xf32> -> vector<2x8xf32>
    %212 = arith.addf %205, %211 : vector<2x8xf32>
    %213 = vector.extract_strided_slice %155 {offsets = [0, 8, 0], sizes = [2, 1, 10], strides = [1, 1, 1]} : vector<2x16x10xf32> to vector<2x1x10xf32>
    %214 = vector.shape_cast %213 : vector<2x1x10xf32> to vector<2x10xf32>
    %c8 = arith.constant 8 : index
    %c0_118 = arith.constant 0 : index
    %c0_119 = arith.constant 0 : index
    %215 = vector.load %arg14[%c8, %c0_118, %c0_119] : memref<16x10x8xbf16, #tpu.memory_space<vmem>>, vector<1x10x8xbf16>
    %216 = vector.shape_cast %215 : vector<1x10x8xbf16> to vector<10x8xbf16>
    %217 = arith.truncf %214 : vector<2x10xf32> to vector<2x10xbf16>
    %cst_120 = arith.constant dense<0.000000e+00> : vector<2x8xf32>
    %218 = tpu.matmul %217, %216, %cst_120 {dimension_numbers = #tpu.dot_dimension_numbers<[1], [0], [0], [1], [0, 0, 1, 1], [], []>} : vector<2x10xbf16>, vector<10x8xbf16>, vector<2x8xf32> -> vector<2x8xf32>
    %219 = arith.addf %212, %218 : vector<2x8xf32>
    %220 = vector.extract_strided_slice %155 {offsets = [0, 9, 0], sizes = [2, 1, 10], strides = [1, 1, 1]} : vector<2x16x10xf32> to vector<2x1x10xf32>
    %221 = vector.shape_cast %220 : vector<2x1x10xf32> to vector<2x10xf32>
    %c9 = arith.constant 9 : index
    %c0_121 = arith.constant 0 : index
    %c0_122 = arith.constant 0 : index
    %222 = vector.load %arg14[%c9, %c0_121, %c0_122] : memref<16x10x8xbf16, #tpu.memory_space<vmem>>, vector<1x10x8xbf16>
    %223 = vector.shape_cast %222 : vector<1x10x8xbf16> to vector<10x8xbf16>
    %224 = arith.truncf %221 : vector<2x10xf32> to vector<2x10xbf16>
    %cst_123 = arith.constant dense<0.000000e+00> : vector<2x8xf32>
    %225 = tpu.matmul %224, %223, %cst_123 {dimension_numbers = #tpu.dot_dimension_numbers<[1], [0], [0], [1], [0, 0, 1, 1], [], []>} : vector<2x10xbf16>, vector<10x8xbf16>, vector<2x8xf32> -> vector<2x8xf32>
    %226 = arith.addf %219, %225 : vector<2x8xf32>
    %227 = vector.extract_strided_slice %155 {offsets = [0, 10, 0], sizes = [2, 1, 10], strides = [1, 1, 1]} : vector<2x16x10xf32> to vector<2x1x10xf32>
    %228 = vector.shape_cast %227 : vector<2x1x10xf32> to vector<2x10xf32>
    %c10 = arith.constant 10 : index
    %c0_124 = arith.constant 0 : index
    %c0_125 = arith.constant 0 : index
    %229 = vector.load %arg14[%c10, %c0_124, %c0_125] : memref<16x10x8xbf16, #tpu.memory_space<vmem>>, vector<1x10x8xbf16>
    %230 = vector.shape_cast %229 : vector<1x10x8xbf16> to vector<10x8xbf16>
    %231 = arith.truncf %228 : vector<2x10xf32> to vector<2x10xbf16>
    %cst_126 = arith.constant dense<0.000000e+00> : vector<2x8xf32>
    %232 = tpu.matmul %231, %230, %cst_126 {dimension_numbers = #tpu.dot_dimension_numbers<[1], [0], [0], [1], [0, 0, 1, 1], [], []>} : vector<2x10xbf16>, vector<10x8xbf16>, vector<2x8xf32> -> vector<2x8xf32>
    %233 = arith.addf %226, %232 : vector<2x8xf32>
    %234 = vector.extract_strided_slice %155 {offsets = [0, 11, 0], sizes = [2, 1, 10], strides = [1, 1, 1]} : vector<2x16x10xf32> to vector<2x1x10xf32>
    %235 = vector.shape_cast %234 : vector<2x1x10xf32> to vector<2x10xf32>
    %c11 = arith.constant 11 : index
    %c0_127 = arith.constant 0 : index
    %c0_128 = arith.constant 0 : index
    %236 = vector.load %arg14[%c11, %c0_127, %c0_128] : memref<16x10x8xbf16, #tpu.memory_space<vmem>>, vector<1x10x8xbf16>
    %237 = vector.shape_cast %236 : vector<1x10x8xbf16> to vector<10x8xbf16>
    %238 = arith.truncf %235 : vector<2x10xf32> to vector<2x10xbf16>
    %cst_129 = arith.constant dense<0.000000e+00> : vector<2x8xf32>
    %239 = tpu.matmul %238, %237, %cst_129 {dimension_numbers = #tpu.dot_dimension_numbers<[1], [0], [0], [1], [0, 0, 1, 1], [], []>} : vector<2x10xbf16>, vector<10x8xbf16>, vector<2x8xf32> -> vector<2x8xf32>
    %240 = arith.addf %233, %239 : vector<2x8xf32>
    %241 = vector.extract_strided_slice %155 {offsets = [0, 12, 0], sizes = [2, 1, 10], strides = [1, 1, 1]} : vector<2x16x10xf32> to vector<2x1x10xf32>
    %242 = vector.shape_cast %241 : vector<2x1x10xf32> to vector<2x10xf32>
    %c12 = arith.constant 12 : index
    %c0_130 = arith.constant 0 : index
    %c0_131 = arith.constant 0 : index
    %243 = vector.load %arg14[%c12, %c0_130, %c0_131] : memref<16x10x8xbf16, #tpu.memory_space<vmem>>, vector<1x10x8xbf16>
    %244 = vector.shape_cast %243 : vector<1x10x8xbf16> to vector<10x8xbf16>
    %245 = arith.truncf %242 : vector<2x10xf32> to vector<2x10xbf16>
    %cst_132 = arith.constant dense<0.000000e+00> : vector<2x8xf32>
    %246 = tpu.matmul %245, %244, %cst_132 {dimension_numbers = #tpu.dot_dimension_numbers<[1], [0], [0], [1], [0, 0, 1, 1], [], []>} : vector<2x10xbf16>, vector<10x8xbf16>, vector<2x8xf32> -> vector<2x8xf32>
    %247 = arith.addf %240, %246 : vector<2x8xf32>
    %248 = vector.extract_strided_slice %155 {offsets = [0, 13, 0], sizes = [2, 1, 10], strides = [1, 1, 1]} : vector<2x16x10xf32> to vector<2x1x10xf32>
    %249 = vector.shape_cast %248 : vector<2x1x10xf32> to vector<2x10xf32>
    %c13 = arith.constant 13 : index
    %c0_133 = arith.constant 0 : index
    %c0_134 = arith.constant 0 : index
    %250 = vector.load %arg14[%c13, %c0_133, %c0_134] : memref<16x10x8xbf16, #tpu.memory_space<vmem>>, vector<1x10x8xbf16>
    %251 = vector.shape_cast %250 : vector<1x10x8xbf16> to vector<10x8xbf16>
    %252 = arith.truncf %249 : vector<2x10xf32> to vector<2x10xbf16>
    %cst_135 = arith.constant dense<0.000000e+00> : vector<2x8xf32>
    %253 = tpu.matmul %252, %251, %cst_135 {dimension_numbers = #tpu.dot_dimension_numbers<[1], [0], [0], [1], [0, 0, 1, 1], [], []>} : vector<2x10xbf16>, vector<10x8xbf16>, vector<2x8xf32> -> vector<2x8xf32>
    %254 = arith.addf %247, %253 : vector<2x8xf32>
    %255 = vector.extract_strided_slice %155 {offsets = [0, 14, 0], sizes = [2, 1, 10], strides = [1, 1, 1]} : vector<2x16x10xf32> to vector<2x1x10xf32>
    %256 = vector.shape_cast %255 : vector<2x1x10xf32> to vector<2x10xf32>
    %c14 = arith.constant 14 : index
    %c0_136 = arith.constant 0 : index
    %c0_137 = arith.constant 0 : index
    %257 = vector.load %arg14[%c14, %c0_136, %c0_137] : memref<16x10x8xbf16, #tpu.memory_space<vmem>>, vector<1x10x8xbf16>
    %258 = vector.shape_cast %257 : vector<1x10x8xbf16> to vector<10x8xbf16>
    %259 = arith.truncf %256 : vector<2x10xf32> to vector<2x10xbf16>
    %cst_138 = arith.constant dense<0.000000e+00> : vector<2x8xf32>
    %260 = tpu.matmul %259, %258, %cst_138 {dimension_numbers = #tpu.dot_dimension_numbers<[1], [0], [0], [1], [0, 0, 1, 1], [], []>} : vector<2x10xbf16>, vector<10x8xbf16>, vector<2x8xf32> -> vector<2x8xf32>
    %261 = arith.addf %254, %260 : vector<2x8xf32>
    %262 = vector.extract_strided_slice %155 {offsets = [0, 15, 0], sizes = [2, 1, 10], strides = [1, 1, 1]} : vector<2x16x10xf32> to vector<2x1x10xf32>
    %263 = vector.shape_cast %262 : vector<2x1x10xf32> to vector<2x10xf32>
    %c15 = arith.constant 15 : index
    %c0_139 = arith.constant 0 : index
    %c0_140 = arith.constant 0 : index
    %264 = vector.load %arg14[%c15, %c0_139, %c0_140] : memref<16x10x8xbf16, #tpu.memory_space<vmem>>, vector<1x10x8xbf16>
    %265 = vector.shape_cast %264 : vector<1x10x8xbf16> to vector<10x8xbf16>
    %266 = arith.truncf %263 : vector<2x10xf32> to vector<2x10xbf16>
    %cst_141 = arith.constant dense<0.000000e+00> : vector<2x8xf32>
    %267 = tpu.matmul %266, %265, %cst_141 {dimension_numbers = #tpu.dot_dimension_numbers<[1], [0], [0], [1], [0, 0, 1, 1], [], []>} : vector<2x10xbf16>, vector<10x8xbf16>, vector<2x8xf32> -> vector<2x8xf32>
    %268 = arith.addf %261, %267 : vector<2x8xf32>
    %c0_142 = arith.constant 0 : index
    %c0_143 = arith.constant 0 : index
    %269 = vector.load %arg15[%c0_142, %c0_143] : memref<1x8xf32, #tpu.memory_space<vmem>>, vector<1x8xf32>
    %270 = vector.broadcast %269 : vector<1x8xf32> to vector<2x8xf32>
    %271 = arith.addf %268, %270 : vector<2x8xf32>
    %c0_144 = arith.constant 0 : index
    %c0_145 = arith.constant 0 : index
    %272 = vector.load %arg16[%c0_144, %c0_145] : memref<8x2xbf16, #tpu.memory_space<vmem>>, vector<8x2xbf16>
    %273 = arith.truncf %271 : vector<2x8xf32> to vector<2x8xbf16>
    %cst_146 = arith.constant dense<0.000000e+00> : vector<2x2xf32>
    %274 = tpu.matmul %273, %272, %cst_146 {dimension_numbers = #tpu.dot_dimension_numbers<[1], [0], [0], [1], [0, 0, 1, 1], [], []>} : vector<2x8xbf16>, vector<8x2xbf16>, vector<2x2xf32> -> vector<2x2xf32>
    %c0_147 = arith.constant 0 : index
    %c0_148 = arith.constant 0 : index
    %275 = vector.load %arg17[%c0_147, %c0_148] : memref<1x2xf32, #tpu.memory_space<vmem>>, vector<1x2xf32>
    %c0_149 = arith.constant 0 : index
    %c0_150 = arith.constant 0 : index
    %276 = vector.load %arg18[%c0_149, %c0_150] : memref<1x2xf32, #tpu.memory_space<vmem>>, vector<1x2xf32>
    %cst_151 = arith.constant dense<0.000000e+00> : vector<2xf32>
    %277 = vector.multi_reduction <add>, %274, %cst_151 [0] : vector<2x2xf32> to vector<2xf32>
    %278 = vector.shape_cast %277 : vector<2xf32> to vector<1x2xf32>
    %cst_152 = arith.constant 2.000000e+00 : f32
    %279 = vector.broadcast %cst_152 : f32 to vector<1x2xf32>
    %280 = arith.divf %278, %279 : vector<1x2xf32>
    %281 = vector.broadcast %280 : vector<1x2xf32> to vector<2x2xf32>
    %282 = arith.subf %274, %281 : vector<2x2xf32>
    %283 = arith.mulf %282, %282 : vector<2x2xf32>
    %cst_153 = arith.constant dense<0.000000e+00> : vector<2xf32>
    %284 = vector.multi_reduction <add>, %283, %cst_153 [0] : vector<2x2xf32> to vector<2xf32>
    %285 = vector.shape_cast %284 : vector<2xf32> to vector<1x2xf32>
    %cst_154 = arith.constant 2.000000e+00 : f32
    %286 = vector.broadcast %cst_154 : f32 to vector<1x2xf32>
    %287 = arith.divf %285, %286 : vector<1x2xf32>
    %cst_155 = arith.constant 9.99999974E-6 : f32
    %288 = vector.broadcast %cst_155 : f32 to vector<1x2xf32>
    %289 = arith.addf %287, %288 : vector<1x2xf32>
    %290 = math.rsqrt %289 : vector<1x2xf32>
    %291 = vector.broadcast %290 : vector<1x2xf32> to vector<2x2xf32>
    %292 = arith.mulf %282, %291 : vector<2x2xf32>
    %293 = vector.broadcast %275 : vector<1x2xf32> to vector<2x2xf32>
    %294 = arith.mulf %292, %293 : vector<2x2xf32>
    %295 = vector.broadcast %276 : vector<1x2xf32> to vector<2x2xf32>
    %296 = arith.addf %294, %295 : vector<2x2xf32>
    %cst_156 = arith.constant 0.000000e+00 : f32
    %297 = vector.broadcast %cst_156 : f32 to vector<2x2xf32>
    %298 = arith.maximumf %296, %297 : vector<2x2xf32>
    %c0_157 = arith.constant 0 : index
    %c0_158 = arith.constant 0 : index
    %299 = vector.load %arg19[%c0_157, %c0_158] : memref<2x16xbf16, #tpu.memory_space<vmem>>, vector<2x16xbf16>
    %300 = arith.truncf %298 : vector<2x2xf32> to vector<2x2xbf16>
    %cst_159 = arith.constant dense<0.000000e+00> : vector<2x16xf32>
    %301 = tpu.matmul %300, %299, %cst_159 {dimension_numbers = #tpu.dot_dimension_numbers<[1], [0], [0], [1], [0, 0, 1, 1], [], []>} : vector<2x2xbf16>, vector<2x16xbf16>, vector<2x16xf32> -> vector<2x16xf32>
    %c0_160 = arith.constant 0 : index
    %c0_161 = arith.constant 0 : index
    %302 = vector.load %arg20[%c0_160, %c0_161] : memref<1x16xf32, #tpu.memory_space<vmem>>, vector<1x16xf32>
    %303 = vector.broadcast %302 : vector<1x16xf32> to vector<2x16xf32>
    %304 = arith.addf %301, %303 : vector<2x16xf32>
    %305 = arith.mulf %271, %271 : vector<2x8xf32>
    %cst_162 = arith.constant dense<0.000000e+00> : vector<2xf32>
    %306 = vector.multi_reduction <add>, %305, %cst_162 [1] : vector<2x8xf32> to vector<2xf32>
    %307 = vector.shape_cast %306 : vector<2xf32> to vector<2x1xf32>
    %cst_163 = arith.constant 1.000000e-24 : f32
    %308 = vector.broadcast %cst_163 : f32 to vector<2x1xf32>
    %309 = arith.maximumf %307, %308 : vector<2x1xf32>
    %310 = math.rsqrt %309 : vector<2x1xf32>
    %311 = vector.broadcast %310 : vector<2x1xf32> to vector<2x8xf32>
    %312 = arith.mulf %271, %311 : vector<2x8xf32>
    %c0_164 = arith.constant 0 : index
    %c0_165 = arith.constant 0 : index
    %313 = vector.load %arg21[%c0_164, %c0_165] : memref<2x8xf32, #tpu.memory_space<vmem>>, vector<2x8xf32>
    tpu.vector_store %arg21[%c0_164, %c0_165], %312 {strides = array<i32>} : memref<2x8xf32, #tpu.memory_space<vmem>>, vector<2x8xf32>,
    %314 = arith.mulf %304, %304 : vector<2x16xf32>
    %cst_166 = arith.constant dense<0.000000e+00> : vector<2xf32>
    %315 = vector.multi_reduction <add>, %314, %cst_166 [1] : vector<2x16xf32> to vector<2xf32>
    %316 = vector.shape_cast %315 : vector<2xf32> to vector<2x1xf32>
    %cst_167 = arith.constant 1.000000e-24 : f32
    %317 = vector.broadcast %cst_167 : f32 to vector<2x1xf32>
    %318 = arith.maximumf %316, %317 : vector<2x1xf32>
    %319 = math.rsqrt %318 : vector<2x1xf32>
    %320 = vector.broadcast %319 : vector<2x1xf32> to vector<2x16xf32>
    %321 = arith.mulf %304, %320 : vector<2x16xf32>
    %c0_168 = arith.constant 0 : index
    %c0_169 = arith.constant 0 : index
    %322 = vector.load %arg22[%c0_168, %c0_169] : memref<2x16xf32, #tpu.memory_space<vmem>>, vector<2x16xf32>
    tpu.vector_store %arg22[%c0_168, %c0_169], %321 {strides = array<i32>} : memref<2x16xf32, #tpu.memory_space<vmem>>, vector<2x16xf32>,
    return
  }
  func.func @transform_0(%arg0: i32) -> (i32, i32, i32) {
    %c0_i32 = arith.constant 0 : i32
    %c0_i32_0 = arith.constant 0 : i32
    %c0_i32_1 = arith.constant 0 : i32
    %c0_i32_2 = arith.constant 0 : i32
    return %c0_i32, %c0_i32_0, %c0_i32_1 : i32, i32, i32
  }
  func.func @transform_1(%arg0: i32) -> (i32, i32, i32) {
    %c0_i32 = arith.constant 0 : i32
    %c0_i32_0 = arith.constant 0 : i32
    %c0_i32_1 = arith.constant 0 : i32
    %c0_i32_2 = arith.constant 0 : i32
    return %c0_i32, %c0_i32_0, %c0_i32_1 : i32, i32, i32
  }
  func.func @transform_2(%arg0: i32) -> (i32, i32) {
    %c0_i32 = arith.constant 0 : i32
    %c0_i32_0 = arith.constant 0 : i32
    %c0_i32_1 = arith.constant 0 : i32
    return %c0_i32, %c0_i32_0 : i32, i32
  }
  func.func @transform_3(%arg0: i32) -> (i32, i32) {
    %c0_i32 = arith.constant 0 : i32
    %c0_i32_0 = arith.constant 0 : i32
    %c0_i32_1 = arith.constant 0 : i32
    return %c0_i32, %c0_i32_0 : i32, i32
  }
  func.func @transform_4(%arg0: i32) -> (i32, i32) {
    %c0_i32 = arith.constant 0 : i32
    %c0_i32_0 = arith.constant 0 : i32
    %c0_i32_1 = arith.constant 0 : i32
    return %c0_i32, %c0_i32_0 : i32, i32
  }
  func.func @transform_5(%arg0: i32) -> (i32, i32) {
    %c0_i32 = arith.constant 0 : i32
    %c0_i32_0 = arith.constant 0 : i32
    %c0_i32_1 = arith.constant 0 : i32
    return %c0_i32, %c0_i32_0 : i32, i32
  }
  func.func @transform_6(%arg0: i32) -> (i32, i32) {
    %c0_i32 = arith.constant 0 : i32
    %c0_i32_0 = arith.constant 0 : i32
    %c0_i32_1 = arith.constant 0 : i32
    return %c0_i32, %c0_i32_0 : i32, i32
  }
  func.func @transform_7(%arg0: i32) -> (i32, i32, i32) {
    %c0_i32 = arith.constant 0 : i32
    %c0_i32_0 = arith.constant 0 : i32
    %c0_i32_1 = arith.constant 0 : i32
    %c0_i32_2 = arith.constant 0 : i32
    return %c0_i32, %c0_i32_0, %c0_i32_1 : i32, i32, i32
  }
  func.func @transform_8(%arg0: i32) -> (i32, i32) {
    %c0_i32 = arith.constant 0 : i32
    %c0_i32_0 = arith.constant 0 : i32
    %c0_i32_1 = arith.constant 0 : i32
    return %c0_i32, %c0_i32_0 : i32, i32
  }
  func.func @transform_9(%arg0: i32) -> (i32, i32) {
    %c0_i32 = arith.constant 0 : i32
    %c0_i32_0 = arith.constant 0 : i32
    %c0_i32_1 = arith.constant 0 : i32
    return %c0_i32, %c0_i32_0 : i32, i32
  }
  func.func @transform_10(%arg0: i32) -> (i32, i32) {
    %c0_i32 = arith.constant 0 : i32
    %c0_i32_0 = arith.constant 0 : i32
    %c0_i32_1 = arith.constant 0 : i32
    return %c0_i32, %c0_i32_0 : i32, i32
  }
  func.func @transform_11(%arg0: i32) -> (i32, i32) {
    %c0_i32 = arith.constant 0 : i32
    %c0_i32_0 = arith.constant 0 : i32
    %c0_i32_1 = arith.constant 0 : i32
    return %c0_i32, %c0_i32_0 : i32, i32
  }
  func.func @transform_12(%arg0: i32) -> (i32, i32) {
    %c0_i32 = arith.constant 0 : i32
    %c0_i32_0 = arith.constant 0 : i32
    %c0_i32_1 = arith.constant 0 : i32
    return %c0_i32, %c0_i32_0 : i32, i32
  }
  func.func @transform_13(%arg0: i32) -> (i32, i32, i32) {
    %c0_i32 = arith.constant 0 : i32
    %c0_i32_0 = arith.constant 0 : i32
    %c0_i32_1 = arith.constant 0 : i32
    %c0_i32_2 = arith.constant 0 : i32
    return %c0_i32, %c0_i32_0, %c0_i32_1 : i32, i32, i32
  }
  func.func @transform_14(%arg0: i32) -> (i32, i32) {
    %c0_i32 = arith.constant 0 : i32
    %c0_i32_0 = arith.constant 0 : i32
    %c0_i32_1 = arith.constant 0 : i32
    return %c0_i32, %c0_i32_0 : i32, i32
  }
  func.func @transform_15(%arg0: i32) -> (i32, i32) {
    %c0_i32 = arith.constant 0 : i32
    %c0_i32_0 = arith.constant 0 : i32
    %c0_i32_1 = arith.constant 0 : i32
    return %c0_i32, %c0_i32_0 : i32, i32
  }
  func.func @transform_16(%arg0: i32) -> (i32, i32) {
    %c0_i32 = arith.constant 0 : i32
    %c0_i32_0 = arith.constant 0 : i32
    %c0_i32_1 = arith.constant 0 : i32
    return %c0_i32, %c0_i32_0 : i32, i32
  }
  func.func @transform_17(%arg0: i32) -> (i32, i32) {
    %c0_i32 = arith.constant 0 : i32
    %c0_i32_0 = arith.constant 0 : i32
    %c0_i32_1 = arith.constant 0 : i32
    return %c0_i32, %c0_i32_0 : i32, i32
  }
  func.func @transform_18(%arg0: i32) -> (i32, i32) {
    %c0_i32 = arith.constant 0 : i32
    %c0_i32_0 = arith.constant 0 : i32
    %c0_i32_1 = arith.constant 0 : i32
    return %c0_i32, %c0_i32_0 : i32, i32
  }
  func.func @transform_19(%arg0: i32) -> (i32, i32) {
    %c0_i32 = arith.constant 0 : i32
    %c0_i32_0 = arith.constant 0 : i32
    %c0_i32_1 = arith.constant 0 : i32
    return %c0_i32, %c0_i32_0 : i32, i32
  }
  func.func @transform_20(%arg0: i32) -> (i32, i32) {
    %c0_i32 = arith.constant 0 : i32
    %c0_i32_0 = arith.constant 0 : i32
    %c0_i32_1 = arith.constant 0 : i32
    return %c0_i32, %c0_i32_0 : i32, i32
  }
  func.func @transform_21(%arg0: i32) -> (i32, i32) {
    %c0_i32 = arith.constant 0 : i32
    %c0_i32_0 = arith.constant 0 : i32
    %c0_i32_1 = arith.constant 0 : i32
    return %c0_i32, %c0_i32_0 : i32, i32
  }
}

</mosaic_0001>

<llo_original>
// kernel: tpu_custom_call.1
$region0: #{tpu_custom_call.1}
  #allocation0 [shape = 'u32[]', space=smem, size = 0x4, offset = 0x4, fixed_abs, tag = 'smem constant byte address 0x4 - core index']
  #allocation1 [shape = 'u32[144,128]{1,0:T(1,128)}', space=vmem, size = 0x12000, scoped, tag = 'internal scratch']
  #allocation2 [shape = 'f32[2,18,8]{2,1,0:T(8,128)}', space=vmem, size = 0x6000, scoped, tag = 'scratch operand']
  %s0 = inlined_call_operand.vmem [shape: f32[2,16,1], index: 0, kind: input, shape index: {}]
  %s1 = inlined_call_operand.vmem [shape: f32[3,1,8], index: 1, kind: input, shape index: {}]
  %s2 = inlined_call_operand.vmem [shape: f32[1,8], index: 2, kind: input, shape index: {}]
  %s3 = inlined_call_operand.vmem [shape: f32[1,8], index: 3, kind: input, shape index: {}]
  %s4 = inlined_call_operand.vmem [shape: f32[1,8], index: 4, kind: input, shape index: {}]
  %s5 = inlined_call_operand.vmem [shape: f32[1,8], index: 5, kind: input, shape index: {}]
  %s6 = inlined_call_operand.vmem [shape: f32[1,8], index: 6, kind: input, shape index: {}]
  %s7 = inlined_call_operand.vmem [shape: bf16[3,8,8], index: 7, kind: input, shape index: {}]
  %s8 = inlined_call_operand.vmem [shape: f32[1,8], index: 8, kind: input, shape index: {}]
  %s9 = inlined_call_operand.vmem [shape: f32[1,8], index: 9, kind: input, shape index: {}]
  %s10 = inlined_call_operand.vmem [shape: f32[1,8], index: 10, kind: input, shape index: {}]
  %s11 = inlined_call_operand.vmem [shape: bf16[8,10], index: 11, kind: input, shape index: {}]
  %s12 = inlined_call_operand.vmem [shape: f32[1,10], index: 12, kind: input, shape index: {}]
  %s13 = inlined_call_operand.vmem [shape: bf16[16,10,8], index: 13, kind: input, shape index: {}]
  %s14 = inlined_call_operand.vmem [shape: f32[1,8], index: 14, kind: input, shape index: {}]
  %s15 = inlined_call_operand.vmem [shape: bf16[8,2], index: 15, kind: input, shape index: {}]
  %s16 = inlined_call_operand.vmem [shape: f32[1,2], index: 16, kind: input, shape index: {}]
  %s17 = inlined_call_operand.vmem [shape: f32[1,2], index: 17, kind: input, shape index: {}]
  %s18 = inlined_call_operand.vmem [shape: bf16[2,16], index: 18, kind: input, shape index: {}]
  %s19 = inlined_call_operand.vmem [shape: f32[1,16], index: 19, kind: input, shape index: {}]
  %s20 = inlined_call_operand.hbm [shape: f32[2,8], index: 20, kind: output, shape index: {0}]
  %s21 = inlined_call_operand.hbm [shape: f32[2,16], index: 21, kind: output, shape index: {1}]
  %22 = xla_tuple %s20, %s21
  %s23 = sld [smem:[#allocation0]]
  $region98: #{tpu_custom_call.1} parent=0
    _
  %s25 = ssub.s32 1, %s23
  %s26 = scalar_select 0, %s25, %s23
  $region1: #{tpu_custom_call.1} parent=0
    #allocation3 [shape = 'u8[1024]{0}', space=vmem, size = 0x400, scoped, tag = 'output window, operand 0, single buffered']
    #allocation4 [shape = 's32[1]{0}', space=sflag, size = 0x4, scoped, tag = 'scoped memory for tpu_custom_call.1']
    #allocation5 [shape = 'u8[1024]{0}', space=vmem, size = 0x400, scoped, tag = 'output window, operand 1, single buffered']
    #allocation6 [shape = 's32[1]{0}', space=sflag, size = 0x4, scoped, tag = 'scoped memory for tpu_custom_call.1']
    %27 = vsyncpa [#allocation4], 0
    %28 = vsyncpa [#allocation6], 0
    // Predicated region
    $region2: #{tpu_custom_call.1} parent=1 // pred_check
      _
    $region3: #{tpu_custom_call.1} parent=1 // pred_check_branch
      %30 = sbr.rel (0) target = $region5
    $region4: #{tpu_custom_call.1} parent=1 // pred_region
      _
    $region5: #{tpu_custom_call.1} parent=1 // pred_fallthru
      _
    // Predicated region
    $region6: #{tpu_custom_call.1} parent=1 // pred_check
      _
    $region7: #{tpu_custom_call.1} parent=1 // pred_check_branch
      %32 = sbr.rel (0) target = $region9
    $region8: #{tpu_custom_call.1} parent=1 // pred_region
      _
    $region9: #{tpu_custom_call.1} parent=1 // pred_fallthru
      _
    // Predicated region
    $region10: #{tpu_custom_call.1} parent=1 // pred_check
      _
    $region11: #{tpu_custom_call.1} parent=1 // pred_check_branch
      %34 = sbr.rel (0) target = $region13
    $region12: #{tpu_custom_call.1} parent=1 // pred_region
      _
    $region13: #{tpu_custom_call.1} parent=1 // pred_fallthru
      _
    // Predicated region
    $region14: #{tpu_custom_call.1} parent=1 // pred_check
      _
    $region15: #{tpu_custom_call.1} parent=1 // pred_check_branch
      %36 = sbr.rel (0) target = $region17
    $region16: #{tpu_custom_call.1} parent=1 // pred_region
      _
    $region17: #{tpu_custom_call.1} parent=1 // pred_fallthru
      _
    // Predicated region
    $region18: #{tpu_custom_call.1} parent=1 // pred_check
      _
    $region19: #{tpu_custom_call.1} parent=1 // pred_check_branch
      %38 = sbr.rel (0) target = $region21
    $region20: #{tpu_custom_call.1} parent=1 // pred_region
      _
    $region21: #{tpu_custom_call.1} parent=1 // pred_fallthru
      _
    // Predicated region
    $region22: #{tpu_custom_call.1} parent=1 // pred_check
      _
    $region23: #{tpu_custom_call.1} parent=1 // pred_check_branch
      %40 = sbr.rel (0) target = $region25
    $region24: #{tpu_custom_call.1} parent=1 // pred_region
      _
    $region25: #{tpu_custom_call.1} parent=1 // pred_fallthru
      _
    // Predicated region
    $region26: #{tpu_custom_call.1} parent=1 // pred_check
      _
    $region27: #{tpu_custom_call.1} parent=1 // pred_check_branch
      %42 = sbr.rel (0) target = $region29
    $region28: #{tpu_custom_call.1} parent=1 // pred_region
      _
    $region29: #{tpu_custom_call.1} parent=1 // pred_fallthru
      _
    // Predicated region
    $region30: #{tpu_custom_call.1} parent=1 // pred_check
      _
    $region31: #{tpu_custom_call.1} parent=1 // pred_check_branch
      %44 = sbr.rel (0) target = $region33
    $region32: #{tpu_custom_call.1} parent=1 // pred_region
      _
    $region33: #{tpu_custom_call.1} parent=1 // pred_fallthru
      _
    // Predicated region
    $region34: #{tpu_custom_call.1} parent=1 // pred_check
      _
    $region35: #{tpu_custom_call.1} parent=1 // pred_check_branch
      %46 = sbr.rel (0) target = $region37
    $region36: #{tpu_custom_call.1} parent=1 // pred_region
      _
    $region37: #{tpu_custom_call.1} parent=1 // pred_fallthru
      _
    // Predicated region
    $region38: #{tpu_custom_call.1} parent=1 // pred_check
      _
    $region39: #{tpu_custom_call.1} parent=1 // pred_check_branch
      %48 = sbr.rel (0) target = $region41
    $region40: #{tpu_custom_call.1} parent=1 // pred_region
      _
    $region41: #{tpu_custom_call.1} parent=1 // pred_fallthru
      _
    // Predicated region
    $region42: #{tpu_custom_call.1} parent=1 // pred_check
      _
    $region43: #{tpu_custom_call.1} parent=1 // pred_check_branch
      %50 = sbr.rel (0) target = $region45
    $region44: #{tpu_custom_call.1} parent=1 // pred_region
      _
    $region45: #{tpu_custom_call.1} parent=1 // pred_fallthru
      _
    // Predicated region
    $region46: #{tpu_custom_call.1} parent=1 // pred_check
      _
    $region47: #{tpu_custom_call.1} parent=1 // pred_check_branch
      %52 = sbr.rel (0) target = $region49
    $region48: #{tpu_custom_call.1} parent=1 // pred_region
      _
    $region49: #{tpu_custom_call.1} parent=1 // pred_fallthru
      _
    // Predicated region
    $region50: #{tpu_custom_call.1} parent=1 // pred_check
      _
    $region51: #{tpu_custom_call.1} parent=1 // pred_check_branch
      %54 = sbr.rel (0) target = $region53
    $region52: #{tpu_custom_call.1} parent=1 // pred_region
      _
    $region53: #{tpu_custom_call.1} parent=1 // pred_fallthru
      _
    // Predicated region
    $region54: #{tpu_custom_call.1} parent=1 // pred_check
      _
    $region55: #{tpu_custom_call.1} parent=1 // pred_check_branch
      %56 = sbr.rel (0) target = $region57
    $region56: #{tpu_custom_call.1} parent=1 // pred_region
      _
    $region57: #{tpu_custom_call.1} parent=1 // pred_fallthru
      _
    // Predicated region
    $region58: #{tpu_custom_call.1} parent=1 // pred_check
      _
    $region59: #{tpu_custom_call.1} parent=1 // pred_check_branch
      %58 = sbr.rel (0) target = $region61
    $region60: #{tpu_custom_call.1} parent=1 // pred_region
      _
    $region61: #{tpu_custom_call.1} parent=1 // pred_fallthru
      _
    // Predicated region
    $region62: #{tpu_custom_call.1} parent=1 // pred_check
      _
    $region63: #{tpu_custom_call.1} parent=1 // pred_check_branch
      %60 = sbr.rel (0) target = $region65
    $region64: #{tpu_custom_call.1} parent=1 // pred_region
      _
    $region65: #{tpu_custom_call.1} parent=1 // pred_fallthru
      _
    // Predicated region
    $region66: #{tpu_custom_call.1} parent=1 // pred_check
      _
    $region67: #{tpu_custom_call.1} parent=1 // pred_check_branch
      %62 = sbr.rel (0) target = $region69
    $region68: #{tpu_custom_call.1} parent=1 // pred_region
      _
    $region69: #{tpu_custom_call.1} parent=1 // pred_fallthru
      _
    // Predicated region
    $region70: #{tpu_custom_call.1} parent=1 // pred_check
      _
    $region71: #{tpu_custom_call.1} parent=1 // pred_check_branch
      %64 = sbr.rel (0) target = $region73
    $region72: #{tpu_custom_call.1} parent=1 // pred_region
      _
    $region73: #{tpu_custom_call.1} parent=1 // pred_fallthru
      _
    // Predicated region
    $region74: #{tpu_custom_call.1} parent=1 // pred_check
      _
    $region75: #{tpu_custom_call.1} parent=1 // pred_check_branch
      %66 = sbr.rel (0) target = $region77
    $region76: #{tpu_custom_call.1} parent=1 // pred_region
      _
    $region77: #{tpu_custom_call.1} parent=1 // pred_fallthru
      _
    // Predicated region
    $region78: #{tpu_custom_call.1} parent=1 // pred_check
      _
    $region79: #{tpu_custom_call.1} parent=1 // pred_check_branch
      %68 = sbr.rel (0) target = $region81
    $region80: #{tpu_custom_call.1} parent=1 // pred_region
      _
    $region81: #{tpu_custom_call.1} parent=1 // pred_fallthru
      _
    %v70 = vld [vmem:[%s0] sm:$0xff]
    %v71 = vld [vmem:[%s0 + $0x8] sm:$0xff]
    %v72 = vld [vmem:[%s0 + $0x10] sm:$0xff]
    %v73 = vld [vmem:[%s0 + $0x18] sm:$0xff]
    %vm74 = vcmask 57344
    %75 = vst.msk [vmem:[#allocation2] sm:$0x1] %vm74, 0.0
    %76 = vst.msk [vmem:[#allocation2 + $0x18] sm:$0x1] %vm74, 0.0
    %77 = vst.msk [vmem:[#allocation2 + $0x11] sm:$0x1] %vm74, 0.0
    %78 = vst.msk [vmem:[#allocation2 + $0x29] sm:$0x1] %vm74, 0.0
    %80 = vset.pattern.permute.xlu0 0
    %81 = vperm.xlu0 %80, %v70
    %v82 = vpop.permute.xlu0 %81
    %85 = vset.pattern.permute.xlu0 0
    %86 = vperm.xlu0 %85, %v71
    %v87 = vpop.permute.xlu0 %86
    %90 = vset.pattern.permute.xlu0 0
    %91 = vperm.xlu0 %90, %v72
    %v92 = vpop.permute.xlu0 %91
    %95 = vset.pattern.permute.xlu0 0
    %96 = vperm.xlu0 %95, %v73
    %v97 = vpop.permute.xlu0 %96
    %vm99 = vcmask 64512
    %100 = vst.msk [vmem:[#allocation2 + $0x1] sm:$0xff] %vm99, %v82
    %101 = vst.msk [vmem:[#allocation2 + $0x9] sm:$0xff] %vm99, %v87
    %102 = vst.msk [vmem:[#allocation2 + $0x19] sm:$0xff] %vm99, %v92
    %103 = vst.msk [vmem:[#allocation2 + $0x21] sm:$0xff] %vm99, %v97
    %v104 = vld [vmem:[%s1] sm:$0x1]
    %v105 = vld [vmem:[%s1 + $0x1] sm:$0x1]
    %v106 = vld [vmem:[%s1 + $0x2] sm:$0x1]
    %v107 = vld [vmem:[#allocation2] sm:$0xff]
    %v108 = vld [vmem:[#allocation2 + $0x8] sm:$0xff]
    %v109 = vld [vmem:[#allocation2 + $0x18] sm:$0xff]
    %v110 = vld [vmem:[#allocation2 + $0x20] sm:$0xff]
    %v112 = vlaneseq
    %v113 = vshrl.u32 %v112, 7
    %v114 = vsub.s32 0, %v113
    %v115 = vrot.slane %v104, %v114
    %v117 = vmul.f32 %v107, %v115
    %v118 = vmul.f32 %v108, %v115
    %v119 = vmul.f32 %v109, %v115
    %v120 = vmul.f32 %v110, %v115
    %v121 = vadd.f32 %v117, 0.0
    %v122 = vadd.f32 %v118, 0.0
    %v123 = vadd.f32 %v119, 0.0
    %v124 = vadd.f32 %v120, 0.0
    %v125 = vld [vmem:[#allocation2 + $0x1] sm:$0xff]
    %v126 = vld [vmem:[#allocation2 + $0x9] sm:$0xff]
    %v127 = vld [vmem:[#allocation2 + $0x19] sm:$0xff]
    %v128 = vld [vmem:[#allocation2 + $0x21] sm:$0xff]
    %v130 = vlaneseq
    %v131 = vshrl.u32 %v130, 7
    %v132 = vsub.s32 0, %v131
    %v133 = vrot.slane %v105, %v132
    %v135 = vmul.f32 %v125, %v133
    %v136 = vmul.f32 %v126, %v133
    %v137 = vmul.f32 %v127, %v133
    %v138 = vmul.f32 %v128, %v133
    %v139 = vadd.f32 %v121, %v135
    %v140 = vadd.f32 %v122, %v136
    %v141 = vadd.f32 %v123, %v137
    %v142 = vadd.f32 %v124, %v138
    %v143 = vld [vmem:[#allocation2 + $0x2] sm:$0xff]
    %v144 = vld [vmem:[#allocation2 + $0xa] sm:$0xff]
    %v145 = vld [vmem:[#allocation2 + $0x1a] sm:$0xff]
    %v146 = vld [vmem:[#allocation2 + $0x22] sm:$0xff]
    %v148 = vlaneseq
    %v149 = vshrl.u32 %v148, 7
    %v150 = vsub.s32 0, %v149
    %v151 = vrot.slane %v106, %v150
    %v153 = vmul.f32 %v143, %v151
    %v154 = vmul.f32 %v144, %v151
    %v155 = vmul.f32 %v145, %v151
    %v156 = vmul.f32 %v146, %v151
    %v157 = vadd.f32 %v139, %v153
    %v158 = vadd.f32 %v140, %v154
    %v159 = vadd.f32 %v141, %v155
    %v160 = vadd.f32 %v142, %v156
    %v161 = vld [vmem:[%s2] sm:$0x1]
    %v163 = vlaneseq
    %v164 = vshrl.u32 %v163, 7
    %v165 = vsub.s32 0, %v164
    %v166 = vrot.slane %v161, %v165
    %v168 = vadd.f32 %v157, %v166
    %v169 = vadd.f32 %v158, %v166
    %v170 = vadd.f32 %v159, %v166
    %v171 = vadd.f32 %v160, %v166
    %v172 = vld [vmem:[%s3] sm:$0x1]
    %v173 = vld [vmem:[%s4] sm:$0x1]
    %v174 = vsel %vm99, %v168, 0.0
    %v175 = vsel %vm99, %v169, 0.0
    %v176 = vadd.f32 %v174, %v175
    %v177 = vrot.slane %v176, 4
    %v178 = vadd.f32 %v176, %v177
    %v179 = vrot.slane %v178, 2
    %v180 = vadd.f32 %v178, %v179
    %v181 = vrot.slane %v180, 1
    %v182 = vadd.f32 %v180, %v181
    %v183 = vsel %vm99, %v170, 0.0
    %v184 = vsel %vm99, %v171, 0.0
    %v185 = vadd.f32 %v183, %v184
    %v186 = vrot.slane %v185, 4
    %v187 = vadd.f32 %v185, %v186
    %v188 = vrot.slane %v187, 2
    %v189 = vadd.f32 %v187, %v188
    %v190 = vrot.slane %v189, 1
    %v191 = vadd.f32 %v189, %v190
    %v192 = vrcp.pop 16.0
    %v193 = vmul.f32 %v182, %v192
    %v194 = vmul.f32 %v191, %v192
    %v195 = vsel %vm99, %v193, 0.0
    %v196 = vsel %vm99, %v194, 0.0
    %v197 = vadd.f32 %v195, %v196
    %v198 = vrcp.pop 2.0
    %v199 = vmul.f32 %v197, %v198
    %v200 = vsub.f32 %v168, %v199
    %v201 = vsub.f32 %v169, %v199
    %v202 = vsub.f32 %v170, %v199
    %v203 = vsub.f32 %v171, %v199
    %v204 = vmul.f32 %v200, %v200
    %v205 = vmul.f32 %v201, %v201
    %v206 = vmul.f32 %v202, %v202
    %v207 = vmul.f32 %v203, %v203
    %v208 = vsel %vm99, %v204, 0.0
    %v209 = vsel %vm99, %v205, 0.0
    %v210 = vadd.f32 %v208, %v209
    %v211 = vrot.slane %v210, 4
    %v212 = vadd.f32 %v210, %v211
    %v213 = vrot.slane %v212, 2
    %v214 = vadd.f32 %v212, %v213
    %v215 = vrot.slane %v214, 1
    %v216 = vadd.f32 %v214, %v215
    %v217 = vsel %vm99, %v206, 0.0
    %v218 = vsel %vm99, %v207, 0.0
    %v219 = vadd.f32 %v217, %v218
    %v220 = vrot.slane %v219, 4
    %v221 = vadd.f32 %v219, %v220
    %v222 = vrot.slane %v221, 2
    %v223 = vadd.f32 %v221, %v222
    %v224 = vrot.slane %v223, 1
    %v225 = vadd.f32 %v223, %v224
    %v226 = vmul.f32 %v216, %v192
    %v227 = vmul.f32 %v225, %v192
    %v228 = vsel %vm99, %v226, 0.0
    %v229 = vsel %vm99, %v227, 0.0
    %v230 = vadd.f32 %v228, %v229
    %v231 = vmul.f32 %v230, %v198
    %v232 = vadd.f32 %v231, 1e-05
    %v233 = vrsqrt.pop %v232
    %v234 = vmul.f32 %v200, %v233
    %v235 = vmul.f32 %v201, %v233
    %v236 = vmul.f32 %v202, %v233
    %v237 = vmul.f32 %v203, %v233
    %v239 = vlaneseq
    %v240 = vshrl.u32 %v239, 7
    %v241 = vsub.s32 0, %v240
    %v242 = vrot.slane %v172, %v241
    %v244 = vmul.f32 %v234, %v242
    %v245 = vmul.f32 %v235, %v242
    %v246 = vmul.f32 %v236, %v242
    %v247 = vmul.f32 %v237, %v242
    %v249 = vlaneseq
    %v250 = vshrl.u32 %v249, 7
    %v251 = vsub.s32 0, %v250
    %v252 = vrot.slane %v173, %v251
    %v254 = vadd.f32 %v244, %v252
    %v255 = vadd.f32 %v245, %v252
    %v256 = vadd.f32 %v246, %v252
    %v257 = vadd.f32 %v247, %v252
    %v258 = vmax.f32 %v254, 0.0
    %v259 = vmax.f32 %v255, 0.0
    %v260 = vmax.f32 %v256, 0.0
    %v261 = vmax.f32 %v257, 0.0
    %v262 = vld [vmem:[%s5] sm:$0x1]
    %v264 = vlaneseq
    %v265 = vshrl.u32 %v264, 7
    %v266 = vsub.s32 0, %v265
    %v267 = vrot.slane %v262, %v266
    %v269 = vmul.f32 %v82, %v267
    %v270 = vmul.f32 %v87, %v267
    %v271 = vmul.f32 %v92, %v267
    %v272 = vmul.f32 %v97, %v267
    %v273 = vld [vmem:[%s6] sm:$0x1]
    %v275 = vlaneseq
    %v276 = vshrl.u32 %v275, 7
    %v277 = vsub.s32 0, %v276
    %v278 = vrot.slane %v273, %v277
    %v280 = vadd.f32 %v269, %v278
    %v281 = vadd.f32 %v270, %v278
    %v282 = vadd.f32 %v271, %v278
    %v283 = vadd.f32 %v272, %v278
    %v284 = vadd.f32 %v258, %v280
    %v285 = vadd.f32 %v259, %v281
    %v286 = vadd.f32 %v260, %v282
    %v287 = vadd.f32 %v261, %v283
    %288 = vst.msk [vmem:[#allocation2 + $0x1] sm:$0xff] %vm99, %v284
    %289 = vst.msk [vmem:[#allocation2 + $0x9] sm:$0xff] %vm99, %v285
    %290 = vst.msk [vmem:[#allocation2 + $0x19] sm:$0xff] %vm99, %v286
    %291 = vst.msk [vmem:[#allocation2 + $0x21] sm:$0xff] %vm99, %v287
    %v292 = vld [vmem:[#allocation2] sm:$0xff]
    %v293 = vld [vmem:[#allocation2 + $0x8] sm:$0xff]
    %v294 = vld [vmem:[#allocation2 + $0x18] sm:$0xff]
    %v295 = vld [vmem:[#allocation2 + $0x20] sm:$0xff]
    %v296 = vld [vmem:[%s7] sm:$0xf]
    %v297 = vpack.c.bf16 %v293, %v292
    %v298 = vpack.c.bf16 %v295, %v294
    %v300 = vsel %vm99, %v297, 0
    %v303 = vsel %vm99, %v298, 0
    %vm305 = vcmask 1043456
    %v307 = vsel %vm305, %v296, 0
    %309 = vmatprep.subr.bf16.mxu0 0
    %310 = vmatpush1.bf16.msra.mxu0 0
    %311 = vmatprep.subr.bf16.mxu0 0
    %312 = vmatpush1.bf16.msra.mxu0 0
    %313 = vmatprep.subr.bf16.mxu0 0
    %314 = vmatpush1.bf16.msra.mxu0 0
    %315 = vmatprep.subr.bf16.mxu0 0
    %316 = vmatpush1.bf16.msra.mxu0 0
    %317 = vmatprep.subr.bf16.mxu0 0
    %318 = vmatpush1.bf16.msra.mxu0 0
    %319 = vmatprep.subr.bf16.mxu0 0
    %320 = vmatpush1.bf16.msra.mxu0 0
    %321 = vmatprep.subr.bf16.mxu0 0
    %322 = vmatpush1.bf16.msra.mxu0 0
    %323 = vmatprep.subr.bf16.mxu0 0
    %324 = vmatpush1.bf16.msra.mxu0 %v307
    %325 = vmatprep.subr.bf16.mxu0 0
    %326 = vmatpush2.bf16.msra.mxu0 0
    %327 = vmatprep.subr.bf16.mxu0 0
    %328 = vmatpush2.bf16.msra.mxu0 0
    %329 = vmatprep.subr.bf16.mxu0 0
    %330 = vmatpush2.bf16.msra.mxu0 0
    %331 = vmatprep.subr.bf16.mxu0 0
    %332 = vmatpush2.bf16.msra.mxu0 0
    %333 = vmatprep.subr.bf16.mxu0 0
    %334 = vmatpush2.bf16.msra.mxu0 0
    %335 = vmatprep.subr.bf16.mxu0 0
    %336 = vmatpush2.bf16.msra.mxu0 0
    %337 = vmatprep.subr.bf16.mxu0 0
    %338 = vmatpush2.bf16.msra.mxu0 0
    %339 = vmatprep.subr.bf16.mxu0 0
    %340 = vmatpush2.bf16.msra.mxu0 0
    %341 = vmatprep.mubr.bf16.mxu0 0
    %342 = vmatmul.mubr.bf16.gmra.mxu0 %v300
    %v343 = vpop.f32.mrf.mxu0
    %v344 = vadd.f32 0.0, %v343
    %v345 = vpop.f32.mrf.mxu0
    %v346 = vpop.f32.mrf.mxu0
    %v347 = vadd.f32 0.0, %v346
    %v348 = vpop.f32.mrf.mxu0
    %349 = vmatprep.mubr.bf16.mxu0 0
    %350 = vmatmul.mubr.bf16.gmra.mxu0 %v303
    %v351 = vpop.f32.mrf.mxu0
    %v352 = vadd.f32 0.0, %v351
    %v353 = vpop.f32.mrf.mxu0
    %v354 = vpop.f32.mrf.mxu0
    %v355 = vadd.f32 0.0, %v354
    %v356 = vpop.f32.mrf.mxu0
    %357 = vdwg.mxu0
    %v358 = vadd.f32 %v344, 0.0
    %v359 = vadd.f32 %v347, 0.0
    %v360 = vadd.f32 %v352, 0.0
    %v361 = vadd.f32 %v355, 0.0
    %v362 = vld [vmem:[#allocation2 + $0x1] sm:$0xff]
    %v363 = vld [vmem:[#allocation2 + $0x9] sm:$0xff]
    %v364 = vld [vmem:[#allocation2 + $0x19] sm:$0xff]
    %v365 = vld [vmem:[#allocation2 + $0x21] sm:$0xff]
    %s366 = scalar_lea.vmem %s7, 4
    %v367 = vld [vmem:[%s366] sm:$0xf]
    %v368 = vpack.c.bf16 %v363, %v362
    %v369 = vpack.c.bf16 %v365, %v364
    %v371 = vsel %vm99, %v368, 0
    %v374 = vsel %vm99, %v369, 0
    %v377 = vsel %vm305, %v367, 0
    %379 = vmatprep.subr.bf16.mxu0 0
    %380 = vmatpush1.bf16.msra.mxu0 0
    %381 = vmatprep.subr.bf16.mxu0 0
    %382 = vmatpush1.bf16.msra.mxu0 0
    %383 = vmatprep.subr.bf16.mxu0 0
    %384 = vmatpush1.bf16.msra.mxu0 0
    %385 = vmatprep.subr.bf16.mxu0 0
    %386 = vmatpush1.bf16.msra.mxu0 0
    %387 = vmatprep.subr.bf16.mxu0 0
    %388 = vmatpush1.bf16.msra.mxu0 0
    %389 = vmatprep.subr.bf16.mxu0 0
    %390 = vmatpush1.bf16.msra.mxu0 0
    %391 = vmatprep.subr.bf16.mxu0 0
    %392 = vmatpush1.bf16.msra.mxu0 0
    %393 = vmatprep.subr.bf16.mxu0 0
    %394 = vmatpush1.bf16.msra.mxu0 %v377
    %395 = vmatprep.subr.bf16.mxu0 0
    %396 = vmatpush2.bf16.msra.mxu0 0
    %397 = vmatprep.subr.bf16.mxu0 0
    %398 = vmatpush2.bf16.msra.mxu0 0
    %399 = vmatprep.subr.bf16.mxu0 0
    %400 = vmatpush2.bf16.msra.mxu0 0
    %401 = vmatprep.subr.bf16.mxu0 0
    %402 = vmatpush2.bf16.msra.mxu0 0
    %403 = vmatprep.subr.bf16.mxu0 0
    %404 = vmatpush2.bf16.msra.mxu0 0
    %405 = vmatprep.subr.bf16.mxu0 0
    %406 = vmatpush2.bf16.msra.mxu0 0
    %407 = vmatprep.subr.bf16.mxu0 0
    %408 = vmatpush2.bf16.msra.mxu0 0
    %409 = vmatprep.subr.bf16.mxu0 0
    %410 = vmatpush2.bf16.msra.mxu0 0
    %411 = vmatprep.mubr.bf16.mxu0 0
    %412 = vmatmul.mubr.bf16.gmra.mxu0 %v371
    %v413 = vpop.f32.mrf.mxu0
    %v414 = vadd.f32 0.0, %v413
    %v415 = vpop.f32.mrf.mxu0
    %v416 = vpop.f32.mrf.mxu0
    %v417 = vadd.f32 0.0, %v416
    %v418 = vpop.f32.mrf.mxu0
    %419 = vmatprep.mubr.bf16.mxu0 0
    %420 = vmatmul.mubr.bf16.gmra.mxu0 %v374
    %v421 = vpop.f32.mrf.mxu0
    %v422 = vadd.f32 0.0, %v421
    %v423 = vpop.f32.mrf.mxu0
    %v424 = vpop.f32.mrf.mxu0
    %v425 = vadd.f32 0.0, %v424
    %v426 = vpop.f32.mrf.mxu0
    %427 = vdwg.mxu0
    %v428 = vadd.f32 %v358, %v414
    %v429 = vadd.f32 %v359, %v417
    %v430 = vadd.f32 %v360, %v422
    %v431 = vadd.f32 %v361, %v425
    %v432 = vld [vmem:[#allocation2 + $0x2] sm:$0xff]
    %v433 = vld [vmem:[#allocation2 + $0xa] sm:$0xff]
    %v434 = vld [vmem:[#allocation2 + $0x1a] sm:$0xff]
    %v435 = vld [vmem:[#allocation2 + $0x22] sm:$0xff]
    %s436 = scalar_lea.vmem %s7, 8
    %v437 = vld [vmem:[%s436] sm:$0xf]
    %v438 = vpack.c.bf16 %v433, %v432
    %v439 = vpack.c.bf16 %v435, %v434
    %v441 = vsel %vm99, %v438, 0
    %v444 = vsel %vm99, %v439, 0
    %v447 = vsel %vm305, %v437, 0
    %449 = vmatprep.subr.bf16.mxu0 0
    %450 = vmatpush1.bf16.msra.mxu0 0
    %451 = vmatprep.subr.bf16.mxu0 0
    %452 = vmatpush1.bf16.msra.mxu0 0
    %453 = vmatprep.subr.bf16.mxu0 0
    %454 = vmatpush1.bf16.msra.mxu0 0
    %455 = vmatprep.subr.bf16.mxu0 0
    %456 = vmatpush1.bf16.msra.mxu0 0
    %457 = vmatprep.subr.bf16.mxu0 0
    %458 = vmatpush1.bf16.msra.mxu0 0
    %459 = vmatprep.subr.bf16.mxu0 0
    %460 = vmatpush1.bf16.msra.mxu0 0
    %461 = vmatprep.subr.bf16.mxu0 0
    %462 = vmatpush1.bf16.msra.mxu0 0
    %463 = vmatprep.subr.bf16.mxu0 0
    %464 = vmatpush1.bf16.msra.mxu0 %v447
    %465 = vmatprep.subr.bf16.mxu0 0
    %466 = vmatpush2.bf16.msra.mxu0 0
    %467 = vmatprep.subr.bf16.mxu0 0
    %468 = vmatpush2.bf16.msra.mxu0 0
    %469 = vmatprep.subr.bf16.mxu0 0
    %470 = vmatpush2.bf16.msra.mxu0 0
    %471 = vmatprep.subr.bf16.mxu0 0
    %472 = vmatpush2.bf16.msra.mxu0 0
    %473 = vmatprep.subr.bf16.mxu0 0
    %474 = vmatpush2.bf16.msra.mxu0 0
    %475 = vmatprep.subr.bf16.mxu0 0
    %476 = vmatpush2.bf16.msra.mxu0 0
    %477 = vmatprep.subr.bf16.mxu0 0
    %478 = vmatpush2.bf16.msra.mxu0 0
    %479 = vmatprep.subr.bf16.mxu0 0
    %480 = vmatpush2.bf16.msra.mxu0 0
    %481 = vmatprep.mubr.bf16.mxu0 0
    %482 = vmatmul.mubr.bf16.gmra.mxu0 %v441
    %v483 = vpop.f32.mrf.mxu0
    %v484 = vadd.f32 0.0, %v483
    %v485 = vpop.f32.mrf.mxu0
    %v486 = vpop.f32.mrf.mxu0
    %v487 = vadd.f32 0.0, %v486
    %v488 = vpop.f32.mrf.mxu0
    %489 = vmatprep.mubr.bf16.mxu0 0
    %490 = vmatmul.mubr.bf16.gmra.mxu0 %v444
    %v491 = vpop.f32.mrf.mxu0
    %v492 = vadd.f32 0.0, %v491
    %v493 = vpop.f32.mrf.mxu0
    %v494 = vpop.f32.mrf.mxu0
    %v495 = vadd.f32 0.0, %v494
    %v496 = vpop.f32.mrf.mxu0
    %497 = vdwg.mxu0
    %v498 = vadd.f32 %v428, %v484
    %v499 = vadd.f32 %v429, %v487
    %v500 = vadd.f32 %v430, %v492
    %v501 = vadd.f32 %v431, %v495
    %v502 = vld [vmem:[%s8] sm:$0x1]
    %v504 = vlaneseq
    %v505 = vshrl.u32 %v504, 7
    %v506 = vsub.s32 0, %v505
    %v507 = vrot.slane %v502, %v506
    %v509 = vadd.f32 %v498, %v507
    %v510 = vadd.f32 %v499, %v507
    %v511 = vadd.f32 %v500, %v507
    %v512 = vadd.f32 %v501, %v507
    %v513 = vld [vmem:[%s9] sm:$0x1]
    %v514 = vld [vmem:[%s10] sm:$0x1]
    %v515 = vsel %vm99, %v509, 0.0
    %v516 = vsel %vm99, %v510, 0.0
    %v517 = vadd.f32 %v515, %v516
    %v518 = vrot.slane %v517, 4
    %v519 = vadd.f32 %v517, %v518
    %v520 = vrot.slane %v519, 2
    %v521 = vadd.f32 %v519, %v520
    %v522 = vrot.slane %v521, 1
    %v523 = vadd.f32 %v521, %v522
    %v524 = vsel %vm99, %v511, 0.0
    %v525 = vsel %vm99, %v512, 0.0
    %v526 = vadd.f32 %v524, %v525
    %v527 = vrot.slane %v526, 4
    %v528 = vadd.f32 %v526, %v527
    %v529 = vrot.slane %v528, 2
    %v530 = vadd.f32 %v528, %v529
    %v531 = vrot.slane %v530, 1
    %v532 = vadd.f32 %v530, %v531
    %v533 = vmul.f32 %v523, %v192
    %v534 = vmul.f32 %v532, %v192
    %v535 = vsel %vm99, %v533, 0.0
    %v536 = vsel %vm99, %v534, 0.0
    %v537 = vadd.f32 %v535, %v536
    %v538 = vmul.f32 %v537, %v198
    %v539 = vsub.f32 %v509, %v538
    %v540 = vsub.f32 %v510, %v538
    %v541 = vsub.f32 %v511, %v538
    %v542 = vsub.f32 %v512, %v538
    %v543 = vmul.f32 %v539, %v539
    %v544 = vmul.f32 %v540, %v540
    %v545 = vmul.f32 %v541, %v541
    %v546 = vmul.f32 %v542, %v542
    %v547 = vsel %vm99, %v543, 0.0
    %v548 = vsel %vm99, %v544, 0.0
    %v549 = vadd.f32 %v547, %v548
    %v550 = vrot.slane %v549, 4
    %v551 = vadd.f32 %v549, %v550
    %v552 = vrot.slane %v551, 2
    %v553 = vadd.f32 %v551, %v552
    %v554 = vrot.slane %v553, 1
    %v555 = vadd.f32 %v553, %v554
    %v556 = vsel %vm99, %v545, 0.0
    %v557 = vsel %vm99, %v546, 0.0
    %v558 = vadd.f32 %v556, %v557
    %v559 = vrot.slane %v558, 4
    %v560 = vadd.f32 %v558, %v559
    %v561 = vrot.slane %v560, 2
    %v562 = vadd.f32 %v560, %v561
    %v563 = vrot.slane %v562, 1
    %v564 = vadd.f32 %v562, %v563
    %v565 = vmul.f32 %v555, %v192
    %v566 = vmul.f32 %v564, %v192
    %v567 = vsel %vm99, %v565, 0.0
    %v568 = vsel %vm99, %v566, 0.0
    %v569 = vadd.f32 %v567, %v568
    %v570 = vmul.f32 %v569, %v198
    %v571 = vadd.f32 %v570, 1e-05
    %v572 = vrsqrt.pop %v571
    %v573 = vmul.f32 %v539, %v572
    %v574 = vmul.f32 %v540, %v572
    %v575 = vmul.f32 %v541, %v572
    %v576 = vmul.f32 %v542, %v572
    %v578 = vlaneseq
    %v579 = vshrl.u32 %v578, 7
    %v580 = vsub.s32 0, %v579
    %v581 = vrot.slane %v513, %v580
    %v583 = vmul.f32 %v573, %v581
    %v584 = vmul.f32 %v574, %v581
    %v585 = vmul.f32 %v575, %v581
    %v586 = vmul.f32 %v576, %v581
    %v588 = vlaneseq
    %v589 = vshrl.u32 %v588, 7
    %v590 = vsub.s32 0, %v589
    %v591 = vrot.slane %v514, %v590
    %v593 = vadd.f32 %v583, %v591
    %v594 = vadd.f32 %v584, %v591
    %v595 = vadd.f32 %v585, %v591
    %v596 = vadd.f32 %v586, %v591
    %v597 = vmax.f32 %v593, 0.0
    %v598 = vmax.f32 %v594, 0.0
    %v599 = vmax.f32 %v595, 0.0
    %v600 = vmax.f32 %v596, 0.0
    %v601 = vadd.f32 %v597, %v284
    %v602 = vadd.f32 %v598, %v285
    %v603 = vadd.f32 %v599, %v286
    %v604 = vadd.f32 %v600, %v287
    %v605 = vmax.f32 %v601, 0.0
    %v606 = vmax.f32 %v602, 0.0
    %v607 = vmax.f32 %v603, 0.0
    %v608 = vmax.f32 %v604, 0.0
    %v609 = vld [vmem:[%s11] sm:$0xf]
    %v610 = vpack.c.bf16 %v606, %v605
    %v611 = vpack.c.bf16 %v608, %v607
    %v612 = vld [vmem:[%s12] sm:$0x1]
    %v614 = vlaneseq
    %v615 = vshrl.u32 %v614, 7
    %v616 = vsub.s32 0, %v615
    %v617 = vrot.slane %v612, %v616
    %v620 = vsel %vm99, %v610, 0
    %v623 = vsel %vm99, %v611, 0
    %v626 = vsel %vm305, %v609, 0
    %628 = vmatprep.subr.bf16.mxu0 0
    %629 = vmatpush1.bf16.msra.mxu0 0
    %630 = vmatprep.subr.bf16.mxu0 0
    %631 = vmatpush1.bf16.msra.mxu0 0
    %632 = vmatprep.subr.bf16.mxu0 0
    %633 = vmatpush1.bf16.msra.mxu0 0
    %634 = vmatprep.subr.bf16.mxu0 0
    %635 = vmatpush1.bf16.msra.mxu0 0
    %636 = vmatprep.subr.bf16.mxu0 0
    %637 = vmatpush1.bf16.msra.mxu0 0
    %638 = vmatprep.subr.bf16.mxu0 0
    %639 = vmatpush1.bf16.msra.mxu0 0
    %640 = vmatprep.subr.bf16.mxu0 0
    %641 = vmatpush1.bf16.msra.mxu0 0
    %642 = vmatprep.subr.bf16.mxu0 0
    %643 = vmatpush1.bf16.msra.mxu0 %v626
    %644 = vmatprep.subr.bf16.mxu0 0
    %645 = vmatpush2.bf16.msra.mxu0 0
    %646 = vmatprep.subr.bf16.mxu0 0
    %647 = vmatpush2.bf16.msra.mxu0 0
    %648 = vmatprep.subr.bf16.mxu0 0
    %649 = vmatpush2.bf16.msra.mxu0 0
    %650 = vmatprep.subr.bf16.mxu0 0
    %651 = vmatpush2.bf16.msra.mxu0 0
    %652 = vmatprep.subr.bf16.mxu0 0
    %653 = vmatpush2.bf16.msra.mxu0 0
    %654 = vmatprep.subr.bf16.mxu0 0
    %655 = vmatpush2.bf16.msra.mxu0 0
    %656 = vmatprep.subr.bf16.mxu0 0
    %657 = vmatpush2.bf16.msra.mxu0 0
    %658 = vmatprep.subr.bf16.mxu0 0
    %659 = vmatpush2.bf16.msra.mxu0 0
    %660 = vmatprep.mubr.bf16.mxu0 0
    %661 = vmatmul.mubr.bf16.gmra.mxu0 %v620
    %v662 = vpop.f32.mrf.mxu0
    %v663 = vadd.f32 %v617, %v662
    %v664 = vpop.f32.mrf.mxu0
    %v665 = vpop.f32.mrf.mxu0
    %v666 = vadd.f32 %v617, %v665
    %v667 = vpop.f32.mrf.mxu0
    %668 = vmatprep.mubr.bf16.mxu0 0
    %669 = vmatmul.mubr.bf16.gmra.mxu0 %v623
    %v670 = vpop.f32.mrf.mxu0
    %v671 = vadd.f32 %v617, %v670
    %v672 = vpop.f32.mrf.mxu0
    %v673 = vpop.f32.mrf.mxu0
    %v674 = vadd.f32 %v617, %v673
    %v675 = vpop.f32.mrf.mxu0
    %676 = vdwg.mxu0
    %v677 = vmax.f32 %v663, 0.0
    %v678 = vmax.f32 %v666, 0.0
    %v679 = vmax.f32 %v671, 0.0
    %v680 = vmax.f32 %v674, 0.0
    %v681 = vld [vmem:[%s13] sm:$0xf]
    %v682 = vld [vmem:[%s13 + $0x4] sm:$0x1]
    %v683 = vpack.c.bf16 %v677, %v677
    %v684 = vpack.c.bf16 %v679, %v679
    %s685 = scalar_lea.vmem %s13, 8
    %v686 = vld [vmem:[%s685] sm:$0xf]
    %v687 = vld [vmem:[%s685 + $0x4] sm:$0x1]
    %v690 = vunpack.c.l.b16 %v683
    %v691 = vunpack.c.l.b16 %v684
    %v692 = vrot.slane %v690, 1
    %vm693 = vcmask 1041409
    %v694 = vsel %vm693, %v691, %v692
    %v695 = vpack.c.b16 %v694, %v694
    %v698 = vunpack.c.l.b16 %v686
    %v699 = vunpack.c.l.b16 %v687
    %v700 = vpack.c.b16 %v699, %v698
    %vm701 = vcmask 80896
    %v703 = vsel %vm701, %v695, 0
    %vm705 = vcmask 1044480
    %v707 = vsel %vm705, %v700, 0
    %709 = vmatprep.subr.bf16.mxu0 0
    %710 = vmatpush1.bf16.msra.mxu0 0
    %711 = vmatprep.subr.bf16.mxu0 0
    %712 = vmatpush1.bf16.msra.mxu0 0
    %713 = vmatprep.subr.bf16.mxu0 0
    %714 = vmatpush1.bf16.msra.mxu0 0
    %715 = vmatprep.subr.bf16.mxu0 0
    %716 = vmatpush1.bf16.msra.mxu0 0
    %717 = vmatprep.subr.bf16.mxu0 0
    %718 = vmatpush1.bf16.msra.mxu0 0
    %719 = vmatprep.subr.bf16.mxu0 0
    %720 = vmatpush1.bf16.msra.mxu0 0
    %721 = vmatprep.subr.bf16.mxu0 0
    %722 = vmatpush1.bf16.msra.mxu0 0
    %723 = vmatprep.subr.bf16.mxu0 0
    %724 = vmatpush1.bf16.msra.mxu0 %v707
    %725 = vmatprep.subr.bf16.mxu0 0
    %726 = vmatpush2.bf16.msra.mxu0 0
    %727 = vmatprep.subr.bf16.mxu0 0
    %728 = vmatpush2.bf16.msra.mxu0 0
    %729 = vmatprep.subr.bf16.mxu0 0
    %730 = vmatpush2.bf16.msra.mxu0 0
    %731 = vmatprep.subr.bf16.mxu0 0
    %732 = vmatpush2.bf16.msra.mxu0 0
    %733 = vmatprep.subr.bf16.mxu0 0
    %734 = vmatpush2.bf16.msra.mxu0 0
    %735 = vmatprep.subr.bf16.mxu0 0
    %736 = vmatpush2.bf16.msra.mxu0 0
    %737 = vmatprep.subr.bf16.mxu0 0
    %738 = vmatpush2.bf16.msra.mxu0 0
    %739 = vmatprep.subr.bf16.mxu0 0
    %740 = vmatpush2.bf16.msra.mxu0 0
    %741 = vmatprep.mubr.bf16.mxu0 0
    %742 = vmatmul.mubr.bf16.gmra.mxu0 %v703
    %v743 = vpop.f32.mrf.mxu0
    %v744 = vadd.f32 0.0, %v743
    %v745 = vpop.f32.mrf.mxu0
    %v746 = vpop.f32.mrf.mxu0
    %v747 = vpop.f32.mrf.mxu0
    %748 = vdwg.mxu0
    %v749 = vrot.slane %v691, 7
    %v750 = vsel %vm693, %v749, %v690
    %v751 = vpack.c.b16 %v750, %v750
    %v754 = vunpack.c.l.b16 %v681
    %v755 = vunpack.c.l.b16 %v682
    %v756 = vpack.c.b16 %v755, %v754
    %v758 = vsel %vm701, %v751, 0
    %v761 = vsel %vm705, %v756, 0
    %763 = vmatprep.subr.bf16.mxu0 0
    %764 = vmatpush1.bf16.msra.mxu0 0
    %765 = vmatprep.subr.bf16.mxu0 0
    %766 = vmatpush1.bf16.msra.mxu0 0
    %767 = vmatprep.subr.bf16.mxu0 0
    %768 = vmatpush1.bf16.msra.mxu0 0
    %769 = vmatprep.subr.bf16.mxu0 0
    %770 = vmatpush1.bf16.msra.mxu0 0
    %771 = vmatprep.subr.bf16.mxu0 0
    %772 = vmatpush1.bf16.msra.mxu0 0
    %773 = vmatprep.subr.bf16.mxu0 0
    %774 = vmatpush1.bf16.msra.mxu0 0
    %775 = vmatprep.subr.bf16.mxu0 0
    %776 = vmatpush1.bf16.msra.mxu0 0
    %777 = vmatprep.subr.bf16.mxu0 0
    %778 = vmatpush1.bf16.msra.mxu0 %v761
    %779 = vmatprep.subr.bf16.mxu0 0
    %780 = vmatpush2.bf16.msra.mxu0 0
    %781 = vmatprep.subr.bf16.mxu0 0
    %782 = vmatpush2.bf16.msra.mxu0 0
    %783 = vmatprep.subr.bf16.mxu0 0
    %784 = vmatpush2.bf16.msra.mxu0 0
    %785 = vmatprep.subr.bf16.mxu0 0
    %786 = vmatpush2.bf16.msra.mxu0 0
    %787 = vmatprep.subr.bf16.mxu0 0
    %788 = vmatpush2.bf16.msra.mxu0 0
    %789 = vmatprep.subr.bf16.mxu0 0
    %790 = vmatpush2.bf16.msra.mxu0 0
    %791 = vmatprep.subr.bf16.mxu0 0
    %792 = vmatpush2.bf16.msra.mxu0 0
    %793 = vmatprep.subr.bf16.mxu0 0
    %794 = vmatpush2.bf16.msra.mxu0 0
    %795 = vmatprep.mubr.bf16.mxu0 0
    %796 = vmatmul.mubr.bf16.gmra.mxu0 %v758
    %v797 = vpop.f32.mrf.mxu0
    %v798 = vadd.f32 %v744, %v797
    %v799 = vpop.f32.mrf.mxu0
    %v800 = vpop.f32.mrf.mxu0
    %v801 = vpop.f32.mrf.mxu0
    %802 = vdwg.mxu0
    %s803 = scalar_lea.vmem %s13, 16
    %v804 = vld [vmem:[%s803] sm:$0xf]
    %v805 = vld [vmem:[%s803 + $0x4] sm:$0x1]
    %v806 = vrot.slane %v690, 2
    %v807 = vrot.slane %v691, 1
    %v808 = vsel %vm693, %v807, %v806
    %v809 = vpack.c.b16 %v808, %v808
    %v812 = vunpack.c.l.b16 %v804
    %v813 = vunpack.c.l.b16 %v805
    %v814 = vpack.c.b16 %v813, %v812
    %v816 = vsel %vm701, %v809, 0
    %v819 = vsel %vm705, %v814, 0
    %821 = vmatprep.subr.bf16.mxu0 0
    %822 = vmatpush1.bf16.msra.mxu0 0
    %823 = vmatprep.subr.bf16.mxu0 0
    %824 = vmatpush1.bf16.msra.mxu0 0
    %825 = vmatprep.subr.bf16.mxu0 0
    %826 = vmatpush1.bf16.msra.mxu0 0
    %827 = vmatprep.subr.bf16.mxu0 0
    %828 = vmatpush1.bf16.msra.mxu0 0
    %829 = vmatprep.subr.bf16.mxu0 0
    %830 = vmatpush1.bf16.msra.mxu0 0
    %831 = vmatprep.subr.bf16.mxu0 0
    %832 = vmatpush1.bf16.msra.mxu0 0
    %833 = vmatprep.subr.bf16.mxu0 0
    %834 = vmatpush1.bf16.msra.mxu0 0
    %835 = vmatprep.subr.bf16.mxu0 0
    %836 = vmatpush1.bf16.msra.mxu0 %v819
    %837 = vmatprep.subr.bf16.mxu0 0
    %838 = vmatpush2.bf16.msra.mxu0 0
    %839 = vmatprep.subr.bf16.mxu0 0
    %840 = vmatpush2.bf16.msra.mxu0 0
    %841 = vmatprep.subr.bf16.mxu0 0
    %842 = vmatpush2.bf16.msra.mxu0 0
    %843 = vmatprep.subr.bf16.mxu0 0
    %844 = vmatpush2.bf16.msra.mxu0 0
    %845 = vmatprep.subr.bf16.mxu0 0
    %846 = vmatpush2.bf16.msra.mxu0 0
    %847 = vmatprep.subr.bf16.mxu0 0
    %848 = vmatpush2.bf16.msra.mxu0 0
    %849 = vmatprep.subr.bf16.mxu0 0
    %850 = vmatpush2.bf16.msra.mxu0 0
    %851 = vmatprep.subr.bf16.mxu0 0
    %852 = vmatpush2.bf16.msra.mxu0 0
    %853 = vmatprep.mubr.bf16.mxu0 0
    %854 = vmatmul.mubr.bf16.gmra.mxu0 %v816
    %v855 = vpop.f32.mrf.mxu0
    %v856 = vadd.f32 0.0, %v855
    %v857 = vpop.f32.mrf.mxu0
    %v858 = vpop.f32.mrf.mxu0
    %v859 = vpop.f32.mrf.mxu0
    %860 = vdwg.mxu0
    %v861 = vadd.f32 %v798, %v856
    %s862 = scalar_lea.vmem %s13, 24
    %v863 = vld [vmem:[%s862] sm:$0xf]
    %v864 = vld [vmem:[%s862 + $0x4] sm:$0x1]
    %v865 = vrot.slane %v690, 3
    %v866 = vrot.slane %v691, 2
    %v867 = vsel %vm693, %v866, %v865
    %v868 = vpack.c.b16 %v867, %v867
    %v871 = vunpack.c.l.b16 %v863
    %v872 = vunpack.c.l.b16 %v864
    %v873 = vpack.c.b16 %v872, %v871
    %v875 = vsel %vm701, %v868, 0
    %v878 = vsel %vm705, %v873, 0
    %880 = vmatprep.subr.bf16.mxu0 0
    %881 = vmatpush1.bf16.msra.mxu0 0
    %882 = vmatprep.subr.bf16.mxu0 0
    %883 = vmatpush1.bf16.msra.mxu0 0
    %884 = vmatprep.subr.bf16.mxu0 0
    %885 = vmatpush1.bf16.msra.mxu0 0
    %886 = vmatprep.subr.bf16.mxu0 0
    %887 = vmatpush1.bf16.msra.mxu0 0
    %888 = vmatprep.subr.bf16.mxu0 0
    %889 = vmatpush1.bf16.msra.mxu0 0
    %890 = vmatprep.subr.bf16.mxu0 0
    %891 = vmatpush1.bf16.msra.mxu0 0
    %892 = vmatprep.subr.bf16.mxu0 0
    %893 = vmatpush1.bf16.msra.mxu0 0
    %894 = vmatprep.subr.bf16.mxu0 0
    %895 = vmatpush1.bf16.msra.mxu0 %v878
    %896 = vmatprep.subr.bf16.mxu0 0
    %897 = vmatpush2.bf16.msra.mxu0 0
    %898 = vmatprep.subr.bf16.mxu0 0
    %899 = vmatpush2.bf16.msra.mxu0 0
    %900 = vmatprep.subr.bf16.mxu0 0
    %901 = vmatpush2.bf16.msra.mxu0 0
    %902 = vmatprep.subr.bf16.mxu0 0
    %903 = vmatpush2.bf16.msra.mxu0 0
    %904 = vmatprep.subr.bf16.mxu0 0
    %905 = vmatpush2.bf16.msra.mxu0 0
    %906 = vmatprep.subr.bf16.mxu0 0
    %907 = vmatpush2.bf16.msra.mxu0 0
    %908 = vmatprep.subr.bf16.mxu0 0
    %909 = vmatpush2.bf16.msra.mxu0 0
    %910 = vmatprep.subr.bf16.mxu0 0
    %911 = vmatpush2.bf16.msra.mxu0 0
    %912 = vmatprep.mubr.bf16.mxu0 0
    %913 = vmatmul.mubr.bf16.gmra.mxu0 %v875
    %v914 = vpop.f32.mrf.mxu0
    %v915 = vadd.f32 0.0, %v914
    %v916 = vpop.f32.mrf.mxu0
    %v917 = vpop.f32.mrf.mxu0
    %v918 = vpop.f32.mrf.mxu0
    %919 = vdwg.mxu0
    %v920 = vadd.f32 %v861, %v915
    %s921 = scalar_lea.vmem %s13, 32
    %v922 = vld [vmem:[%s921] sm:$0xf]
    %v923 = vld [vmem:[%s921 + $0x4] sm:$0x1]
    %v924 = vrot.slane %v690, 4
    %v925 = vrot.slane %v691, 3
    %v926 = vsel %vm693, %v925, %v924
    %v927 = vpack.c.b16 %v926, %v926
    %v930 = vunpack.c.l.b16 %v922
    %v931 = vunpack.c.l.b16 %v923
    %v932 = vpack.c.b16 %v931, %v930
    %v934 = vsel %vm701, %v927, 0
    %v937 = vsel %vm705, %v932, 0
    %939 = vmatprep.subr.bf16.mxu0 0
    %940 = vmatpush1.bf16.msra.mxu0 0
    %941 = vmatprep.subr.bf16.mxu0 0
    %942 = vmatpush1.bf16.msra.mxu0 0
    %943 = vmatprep.subr.bf16.mxu0 0
    %944 = vmatpush1.bf16.msra.mxu0 0
    %945 = vmatprep.subr.bf16.mxu0 0
    %946 = vmatpush1.bf16.msra.mxu0 0
    %947 = vmatprep.subr.bf16.mxu0 0
    %948 = vmatpush1.bf16.msra.mxu0 0
    %949 = vmatprep.subr.bf16.mxu0 0
    %950 = vmatpush1.bf16.msra.mxu0 0
    %951 = vmatprep.subr.bf16.mxu0 0
    %952 = vmatpush1.bf16.msra.mxu0 0
    %953 = vmatprep.subr.bf16.mxu0 0
    %954 = vmatpush1.bf16.msra.mxu0 %v937
    %955 = vmatprep.subr.bf16.mxu0 0
    %956 = vmatpush2.bf16.msra.mxu0 0
    %957 = vmatprep.subr.bf16.mxu0 0
    %958 = vmatpush2.bf16.msra.mxu0 0
    %959 = vmatprep.subr.bf16.mxu0 0
    %960 = vmatpush2.bf16.msra.mxu0 0
    %961 = vmatprep.subr.bf16.mxu0 0
    %962 = vmatpush2.bf16.msra.mxu0 0
    %963 = vmatprep.subr.bf16.mxu0 0
    %964 = vmatpush2.bf16.msra.mxu0 0
    %965 = vmatprep.subr.bf16.mxu0 0
    %966 = vmatpush2.bf16.msra.mxu0 0
    %967 = vmatprep.subr.bf16.mxu0 0
    %968 = vmatpush2.bf16.msra.mxu0 0
    %969 = vmatprep.subr.bf16.mxu0 0
    %970 = vmatpush2.bf16.msra.mxu0 0
    %971 = vmatprep.mubr.bf16.mxu0 0
    %972 = vmatmul.mubr.bf16.gmra.mxu0 %v934
    %v973 = vpop.f32.mrf.mxu0
    %v974 = vadd.f32 0.0, %v973
    %v975 = vpop.f32.mrf.mxu0
    %v976 = vpop.f32.mrf.mxu0
    %v977 = vpop.f32.mrf.mxu0
    %978 = vdwg.mxu0
    %v979 = vadd.f32 %v920, %v974
    %s980 = scalar_lea.vmem %s13, 40
    %v981 = vld [vmem:[%s980] sm:$0xf]
    %v982 = vld [vmem:[%s980 + $0x4] sm:$0x1]
    %v983 = vrot.slane %v690, 5
    %v984 = vrot.slane %v691, 4
    %v985 = vsel %vm693, %v984, %v983
    %v986 = vpack.c.b16 %v985, %v985
    %v989 = vunpack.c.l.b16 %v981
    %v990 = vunpack.c.l.b16 %v982
    %v991 = vpack.c.b16 %v990, %v989
    %v993 = vsel %vm701, %v986, 0
    %v996 = vsel %vm705, %v991, 0
    %998 = vmatprep.subr.bf16.mxu0 0
    %999 = vmatpush1.bf16.msra.mxu0 0
    %1000 = vmatprep.subr.bf16.mxu0 0
    %1001 = vmatpush1.bf16.msra.mxu0 0
    %1002 = vmatprep.subr.bf16.mxu0 0
    %1003 = vmatpush1.bf16.msra.mxu0 0
    %1004 = vmatprep.subr.bf16.mxu0 0
    %1005 = vmatpush1.bf16.msra.mxu0 0
    %1006 = vmatprep.subr.bf16.mxu0 0
    %1007 = vmatpush1.bf16.msra.mxu0 0
    %1008 = vmatprep.subr.bf16.mxu0 0
    %1009 = vmatpush1.bf16.msra.mxu0 0
    %1010 = vmatprep.subr.bf16.mxu0 0
    %1011 = vmatpush1.bf16.msra.mxu0 0
    %1012 = vmatprep.subr.bf16.mxu0 0
    %1013 = vmatpush1.bf16.msra.mxu0 %v996
    %1014 = vmatprep.subr.bf16.mxu0 0
    %1015 = vmatpush2.bf16.msra.mxu0 0
    %1016 = vmatprep.subr.bf16.mxu0 0
    %1017 = vmatpush2.bf16.msra.mxu0 0
    %1018 = vmatprep.subr.bf16.mxu0 0
    %1019 = vmatpush2.bf16.msra.mxu0 0
    %1020 = vmatprep.subr.bf16.mxu0 0
    %1021 = vmatpush2.bf16.msra.mxu0 0
    %1022 = vmatprep.subr.bf16.mxu0 0
    %1023 = vmatpush2.bf16.msra.mxu0 0
    %1024 = vmatprep.subr.bf16.mxu0 0
    %1025 = vmatpush2.bf16.msra.mxu0 0
    %1026 = vmatprep.subr.bf16.mxu0 0
    %1027 = vmatpush2.bf16.msra.mxu0 0
    %1028 = vmatprep.subr.bf16.mxu0 0
    %1029 = vmatpush2.bf16.msra.mxu0 0
    %1030 = vmatprep.mubr.bf16.mxu0 0
    %1031 = vmatmul.mubr.bf16.gmra.mxu0 %v993
    %v1032 = vpop.f32.mrf.mxu0
    %v1033 = vadd.f32 0.0, %v1032
    %v1034 = vpop.f32.mrf.mxu0
    %v1035 = vpop.f32.mrf.mxu0
    %v1036 = vpop.f32.mrf.mxu0
    %1037 = vdwg.mxu0
    %v1038 = vadd.f32 %v979, %v1033
    %s1039 = scalar_lea.vmem %s13, 48
    %v1040 = vld [vmem:[%s1039] sm:$0xf]
    %v1041 = vld [vmem:[%s1039 + $0x4] sm:$0x1]
    %v1042 = vrot.slane %v690, 6
    %v1043 = vrot.slane %v691, 5
    %v1044 = vsel %vm693, %v1043, %v1042
    %v1045 = vpack.c.b16 %v1044, %v1044
    %v1048 = vunpack.c.l.b16 %v1040
    %v1049 = vunpack.c.l.b16 %v1041
    %v1050 = vpack.c.b16 %v1049, %v1048
    %v1052 = vsel %vm701, %v1045, 0
    %v1055 = vsel %vm705, %v1050, 0
    %1057 = vmatprep.subr.bf16.mxu0 0
    %1058 = vmatpush1.bf16.msra.mxu0 0
    %1059 = vmatprep.subr.bf16.mxu0 0
    %1060 = vmatpush1.bf16.msra.mxu0 0
    %1061 = vmatprep.subr.bf16.mxu0 0
    %1062 = vmatpush1.bf16.msra.mxu0 0
    %1063 = vmatprep.subr.bf16.mxu0 0
    %1064 = vmatpush1.bf16.msra.mxu0 0
    %1065 = vmatprep.subr.bf16.mxu0 0
    %1066 = vmatpush1.bf16.msra.mxu0 0
    %1067 = vmatprep.subr.bf16.mxu0 0
    %1068 = vmatpush1.bf16.msra.mxu0 0
    %1069 = vmatprep.subr.bf16.mxu0 0
    %1070 = vmatpush1.bf16.msra.mxu0 0
    %1071 = vmatprep.subr.bf16.mxu0 0
    %1072 = vmatpush1.bf16.msra.mxu0 %v1055
    %1073 = vmatprep.subr.bf16.mxu0 0
    %1074 = vmatpush2.bf16.msra.mxu0 0
    %1075 = vmatprep.subr.bf16.mxu0 0
    %1076 = vmatpush2.bf16.msra.mxu0 0
    %1077 = vmatprep.subr.bf16.mxu0 0
    %1078 = vmatpush2.bf16.msra.mxu0 0
    %1079 = vmatprep.subr.bf16.mxu0 0
    %1080 = vmatpush2.bf16.msra.mxu0 0
    %1081 = vmatprep.subr.bf16.mxu0 0
    %1082 = vmatpush2.bf16.msra.mxu0 0
    %1083 = vmatprep.subr.bf16.mxu0 0
    %1084 = vmatpush2.bf16.msra.mxu0 0
    %1085 = vmatprep.subr.bf16.mxu0 0
    %1086 = vmatpush2.bf16.msra.mxu0 0
    %1087 = vmatprep.subr.bf16.mxu0 0
    %1088 = vmatpush2.bf16.msra.mxu0 0
    %1089 = vmatprep.mubr.bf16.mxu0 0
    %1090 = vmatmul.mubr.bf16.gmra.mxu0 %v1052
    %v1091 = vpop.f32.mrf.mxu0
    %v1092 = vadd.f32 0.0, %v1091
    %v1093 = vpop.f32.mrf.mxu0
    %v1094 = vpop.f32.mrf.mxu0
    %v1095 = vpop.f32.mrf.mxu0
    %1096 = vdwg.mxu0
    %v1097 = vadd.f32 %v1038, %v1092
    %s1098 = scalar_lea.vmem %s13, 56
    %v1099 = vld [vmem:[%s1098] sm:$0xf]
    %v1100 = vld [vmem:[%s1098 + $0x4] sm:$0x1]
    %v1101 = vrot.slane %v690, 7
    %v1102 = vrot.slane %v691, 6
    %v1103 = vsel %vm693, %v1102, %v1101
    %v1104 = vpack.c.b16 %v1103, %v1103
    %v1107 = vunpack.c.l.b16 %v1099
    %v1108 = vunpack.c.l.b16 %v1100
    %v1109 = vpack.c.b16 %v1108, %v1107
    %v1111 = vsel %vm701, %v1104, 0
    %v1114 = vsel %vm705, %v1109, 0
    %1116 = vmatprep.subr.bf16.mxu0 0
    %1117 = vmatpush1.bf16.msra.mxu0 0
    %1118 = vmatprep.subr.bf16.mxu0 0
    %1119 = vmatpush1.bf16.msra.mxu0 0
    %1120 = vmatprep.subr.bf16.mxu0 0
    %1121 = vmatpush1.bf16.msra.mxu0 0
    %1122 = vmatprep.subr.bf16.mxu0 0
    %1123 = vmatpush1.bf16.msra.mxu0 0
    %1124 = vmatprep.subr.bf16.mxu0 0
    %1125 = vmatpush1.bf16.msra.mxu0 0
    %1126 = vmatprep.subr.bf16.mxu0 0
    %1127 = vmatpush1.bf16.msra.mxu0 0
    %1128 = vmatprep.subr.bf16.mxu0 0
    %1129 = vmatpush1.bf16.msra.mxu0 0
    %1130 = vmatprep.subr.bf16.mxu0 0
    %1131 = vmatpush1.bf16.msra.mxu0 %v1114
    %1132 = vmatprep.subr.bf16.mxu0 0
    %1133 = vmatpush2.bf16.msra.mxu0 0
    %1134 = vmatprep.subr.bf16.mxu0 0
    %1135 = vmatpush2.bf16.msra.mxu0 0
    %1136 = vmatprep.subr.bf16.mxu0 0
    %1137 = vmatpush2.bf16.msra.mxu0 0
    %1138 = vmatprep.subr.bf16.mxu0 0
    %1139 = vmatpush2.bf16.msra.mxu0 0
    %1140 = vmatprep.subr.bf16.mxu0 0
    %1141 = vmatpush2.bf16.msra.mxu0 0
    %1142 = vmatprep.subr.bf16.mxu0 0
    %1143 = vmatpush2.bf16.msra.mxu0 0
    %1144 = vmatprep.subr.bf16.mxu0 0
    %1145 = vmatpush2.bf16.msra.mxu0 0
    %1146 = vmatprep.subr.bf16.mxu0 0
    %1147 = vmatpush2.bf16.msra.mxu0 0
    %1148 = vmatprep.mubr.bf16.mxu0 0
    %1149 = vmatmul.mubr.bf16.gmra.mxu0 %v1111
    %v1150 = vpop.f32.mrf.mxu0
    %v1151 = vadd.f32 0.0, %v1150
    %v1152 = vpop.f32.mrf.mxu0
    %v1153 = vpop.f32.mrf.mxu0
    %v1154 = vpop.f32.mrf.mxu0
    %1155 = vdwg.mxu0
    %v1156 = vadd.f32 %v1097, %v1151
    %s1157 = scalar_lea.vmem %s13, 64
    %v1158 = vld [vmem:[%s1157] sm:$0xf]
    %v1159 = vld [vmem:[%s1157 + $0x4] sm:$0x1]
    %v1160 = vpack.c.bf16 %v678, %v678
    %v1161 = vpack.c.bf16 %v680, %v680
    %v1164 = vunpack.c.l.b16 %v1160
    %v1165 = vunpack.c.l.b16 %v1161
    %v1166 = vrot.slane %v1165, 7
    %v1167 = vsel %vm693, %v1166, %v1164
    %v1168 = vpack.c.b16 %v1167, %v1167
    %v1171 = vunpack.c.l.b16 %v1158
    %v1172 = vunpack.c.l.b16 %v1159
    %v1173 = vpack.c.b16 %v1172, %v1171
    %v1175 = vsel %vm701, %v1168, 0
    %v1178 = vsel %vm705, %v1173, 0
    %1180 = vmatprep.subr.bf16.mxu0 0
    %1181 = vmatpush1.bf16.msra.mxu0 0
    %1182 = vmatprep.subr.bf16.mxu0 0
    %1183 = vmatpush1.bf16.msra.mxu0 0
    %1184 = vmatprep.subr.bf16.mxu0 0
    %1185 = vmatpush1.bf16.msra.mxu0 0
    %1186 = vmatprep.subr.bf16.mxu0 0
    %1187 = vmatpush1.bf16.msra.mxu0 0
    %1188 = vmatprep.subr.bf16.mxu0 0
    %1189 = vmatpush1.bf16.msra.mxu0 0
    %1190 = vmatprep.subr.bf16.mxu0 0
    %1191 = vmatpush1.bf16.msra.mxu0 0
    %1192 = vmatprep.subr.bf16.mxu0 0
    %1193 = vmatpush1.bf16.msra.mxu0 0
    %1194 = vmatprep.subr.bf16.mxu0 0
    %1195 = vmatpush1.bf16.msra.mxu0 %v1178
    %1196 = vmatprep.subr.bf16.mxu0 0
    %1197 = vmatpush2.bf16.msra.mxu0 0
    %1198 = vmatprep.subr.bf16.mxu0 0
    %1199 = vmatpush2.bf16.msra.mxu0 0
    %1200 = vmatprep.subr.bf16.mxu0 0
    %1201 = vmatpush2.bf16.msra.mxu0 0
    %1202 = vmatprep.subr.bf16.mxu0 0
    %1203 = vmatpush2.bf16.msra.mxu0 0
    %1204 = vmatprep.subr.bf16.mxu0 0
    %1205 = vmatpush2.bf16.msra.mxu0 0
    %1206 = vmatprep.subr.bf16.mxu0 0
    %1207 = vmatpush2.bf16.msra.mxu0 0
    %1208 = vmatprep.subr.bf16.mxu0 0
    %1209 = vmatpush2.bf16.msra.mxu0 0
    %1210 = vmatprep.subr.bf16.mxu0 0
    %1211 = vmatpush2.bf16.msra.mxu0 0
    %1212 = vmatprep.mubr.bf16.mxu0 0
    %1213 = vmatmul.mubr.bf16.gmra.mxu0 %v1175
    %v1214 = vpop.f32.mrf.mxu0
    %v1215 = vadd.f32 0.0, %v1214
    %v1216 = vpop.f32.mrf.mxu0
    %v1217 = vpop.f32.mrf.mxu0
    %v1218 = vpop.f32.mrf.mxu0
    %1219 = vdwg.mxu0
    %v1220 = vadd.f32 %v1156, %v1215
    %s1221 = scalar_lea.vmem %s13, 72
    %v1222 = vld [vmem:[%s1221] sm:$0xf]
    %v1223 = vld [vmem:[%s1221 + $0x4] sm:$0x1]
    %v1224 = vrot.slane %v1164, 1
    %v1225 = vsel %vm693, %v1165, %v1224
    %v1226 = vpack.c.b16 %v1225, %v1225
    %v1229 = vunpack.c.l.b16 %v1222
    %v1230 = vunpack.c.l.b16 %v1223
    %v1231 = vpack.c.b16 %v1230, %v1229
    %v1233 = vsel %vm701, %v1226, 0
    %v1236 = vsel %vm705, %v1231, 0
    %1238 = vmatprep.subr.bf16.mxu0 0
    %1239 = vmatpush1.bf16.msra.mxu0 0
    %1240 = vmatprep.subr.bf16.mxu0 0
    %1241 = vmatpush1.bf16.msra.mxu0 0
    %1242 = vmatprep.subr.bf16.mxu0 0
    %1243 = vmatpush1.bf16.msra.mxu0 0
    %1244 = vmatprep.subr.bf16.mxu0 0
    %1245 = vmatpush1.bf16.msra.mxu0 0
    %1246 = vmatprep.subr.bf16.mxu0 0
    %1247 = vmatpush1.bf16.msra.mxu0 0
    %1248 = vmatprep.subr.bf16.mxu0 0
    %1249 = vmatpush1.bf16.msra.mxu0 0
    %1250 = vmatprep.subr.bf16.mxu0 0
    %1251 = vmatpush1.bf16.msra.mxu0 0
    %1252 = vmatprep.subr.bf16.mxu0 0
    %1253 = vmatpush1.bf16.msra.mxu0 %v1236
    %1254 = vmatprep.subr.bf16.mxu0 0
    %1255 = vmatpush2.bf16.msra.mxu0 0
    %1256 = vmatprep.subr.bf16.mxu0 0
    %1257 = vmatpush2.bf16.msra.mxu0 0
    %1258 = vmatprep.subr.bf16.mxu0 0
    %1259 = vmatpush2.bf16.msra.mxu0 0
    %1260 = vmatprep.subr.bf16.mxu0 0
    %1261 = vmatpush2.bf16.msra.mxu0 0
    %1262 = vmatprep.subr.bf16.mxu0 0
    %1263 = vmatpush2.bf16.msra.mxu0 0
    %1264 = vmatprep.subr.bf16.mxu0 0
    %1265 = vmatpush2.bf16.msra.mxu0 0
    %1266 = vmatprep.subr.bf16.mxu0 0
    %1267 = vmatpush2.bf16.msra.mxu0 0
    %1268 = vmatprep.subr.bf16.mxu0 0
    %1269 = vmatpush2.bf16.msra.mxu0 0
    %1270 = vmatprep.mubr.bf16.mxu0 0
    %1271 = vmatmul.mubr.bf16.gmra.mxu0 %v1233
    %v1272 = vpop.f32.mrf.mxu0
    %v1273 = vadd.f32 0.0, %v1272
    %v1274 = vpop.f32.mrf.mxu0
    %v1275 = vpop.f32.mrf.mxu0
    %v1276 = vpop.f32.mrf.mxu0
    %1277 = vdwg.mxu0
    %v1278 = vadd.f32 %v1220, %v1273
    %s1279 = scalar_lea.vmem %s13, 80
    %v1280 = vld [vmem:[%s1279] sm:$0xf]
    %v1281 = vld [vmem:[%s1279 + $0x4] sm:$0x1]
    %v1282 = vrot.slane %v1164, 2
    %v1283 = vrot.slane %v1165, 1
    %v1284 = vsel %vm693, %v1283, %v1282
    %v1285 = vpack.c.b16 %v1284, %v1284
    %v1288 = vunpack.c.l.b16 %v1280
    %v1289 = vunpack.c.l.b16 %v1281
    %v1290 = vpack.c.b16 %v1289, %v1288
    %v1292 = vsel %vm701, %v1285, 0
    %v1295 = vsel %vm705, %v1290, 0
    %1297 = vmatprep.subr.bf16.mxu0 0
    %1298 = vmatpush1.bf16.msra.mxu0 0
    %1299 = vmatprep.subr.bf16.mxu0 0
    %1300 = vmatpush1.bf16.msra.mxu0 0
    %1301 = vmatprep.subr.bf16.mxu0 0
    %1302 = vmatpush1.bf16.msra.mxu0 0
    %1303 = vmatprep.subr.bf16.mxu0 0
    %1304 = vmatpush1.bf16.msra.mxu0 0
    %1305 = vmatprep.subr.bf16.mxu0 0
    %1306 = vmatpush1.bf16.msra.mxu0 0
    %1307 = vmatprep.subr.bf16.mxu0 0
    %1308 = vmatpush1.bf16.msra.mxu0 0
    %1309 = vmatprep.subr.bf16.mxu0 0
    %1310 = vmatpush1.bf16.msra.mxu0 0
    %1311 = vmatprep.subr.bf16.mxu0 0
    %1312 = vmatpush1.bf16.msra.mxu0 %v1295
    %1313 = vmatprep.subr.bf16.mxu0 0
    %1314 = vmatpush2.bf16.msra.mxu0 0
    %1315 = vmatprep.subr.bf16.mxu0 0
    %1316 = vmatpush2.bf16.msra.mxu0 0
    %1317 = vmatprep.subr.bf16.mxu0 0
    %1318 = vmatpush2.bf16.msra.mxu0 0
    %1319 = vmatprep.subr.bf16.mxu0 0
    %1320 = vmatpush2.bf16.msra.mxu0 0
    %1321 = vmatprep.subr.bf16.mxu0 0
    %1322 = vmatpush2.bf16.msra.mxu0 0
    %1323 = vmatprep.subr.bf16.mxu0 0
    %1324 = vmatpush2.bf16.msra.mxu0 0
    %1325 = vmatprep.subr.bf16.mxu0 0
    %1326 = vmatpush2.bf16.msra.mxu0 0
    %1327 = vmatprep.subr.bf16.mxu0 0
    %1328 = vmatpush2.bf16.msra.mxu0 0
    %1329 = vmatprep.mubr.bf16.mxu0 0
    %1330 = vmatmul.mubr.bf16.gmra.mxu0 %v1292
    %v1331 = vpop.f32.mrf.mxu0
    %v1332 = vadd.f32 0.0, %v1331
    %v1333 = vpop.f32.mrf.mxu0
    %v1334 = vpop.f32.mrf.mxu0
    %v1335 = vpop.f32.mrf.mxu0
    %1336 = vdwg.mxu0
    %v1337 = vadd.f32 %v1278, %v1332
    %s1338 = scalar_lea.vmem %s13, 88
    %v1339 = vld [vmem:[%s1338] sm:$0xf]
    %v1340 = vld [vmem:[%s1338 + $0x4] sm:$0x1]
    %v1341 = vrot.slane %v1164, 3
    %v1342 = vrot.slane %v1165, 2
    %v1343 = vsel %vm693, %v1342, %v1341
    %v1344 = vpack.c.b16 %v1343, %v1343
    %v1347 = vunpack.c.l.b16 %v1339
    %v1348 = vunpack.c.l.b16 %v1340
    %v1349 = vpack.c.b16 %v1348, %v1347
    %v1351 = vsel %vm701, %v1344, 0
    %v1354 = vsel %vm705, %v1349, 0
    %1356 = vmatprep.subr.bf16.mxu0 0
    %1357 = vmatpush1.bf16.msra.mxu0 0
    %1358 = vmatprep.subr.bf16.mxu0 0
    %1359 = vmatpush1.bf16.msra.mxu0 0
    %1360 = vmatprep.subr.bf16.mxu0 0
    %1361 = vmatpush1.bf16.msra.mxu0 0
    %1362 = vmatprep.subr.bf16.mxu0 0
    %1363 = vmatpush1.bf16.msra.mxu0 0
    %1364 = vmatprep.subr.bf16.mxu0 0
    %1365 = vmatpush1.bf16.msra.mxu0 0
    %1366 = vmatprep.subr.bf16.mxu0 0
    %1367 = vmatpush1.bf16.msra.mxu0 0
    %1368 = vmatprep.subr.bf16.mxu0 0
    %1369 = vmatpush1.bf16.msra.mxu0 0
    %1370 = vmatprep.subr.bf16.mxu0 0
    %1371 = vmatpush1.bf16.msra.mxu0 %v1354
    %1372 = vmatprep.subr.bf16.mxu0 0
    %1373 = vmatpush2.bf16.msra.mxu0 0
    %1374 = vmatprep.subr.bf16.mxu0 0
    %1375 = vmatpush2.bf16.msra.mxu0 0
    %1376 = vmatprep.subr.bf16.mxu0 0
    %1377 = vmatpush2.bf16.msra.mxu0 0
    %1378 = vmatprep.subr.bf16.mxu0 0
    %1379 = vmatpush2.bf16.msra.mxu0 0
    %1380 = vmatprep.subr.bf16.mxu0 0
    %1381 = vmatpush2.bf16.msra.mxu0 0
    %1382 = vmatprep.subr.bf16.mxu0 0
    %1383 = vmatpush2.bf16.msra.mxu0 0
    %1384 = vmatprep.subr.bf16.mxu0 0
    %1385 = vmatpush2.bf16.msra.mxu0 0
    %1386 = vmatprep.subr.bf16.mxu0 0
    %1387 = vmatpush2.bf16.msra.mxu0 0
    %1388 = vmatprep.mubr.bf16.mxu0 0
    %1389 = vmatmul.mubr.bf16.gmra.mxu0 %v1351
    %v1390 = vpop.f32.mrf.mxu0
    %v1391 = vadd.f32 0.0, %v1390
    %v1392 = vpop.f32.mrf.mxu0
    %v1393 = vpop.f32.mrf.mxu0
    %v1394 = vpop.f32.mrf.mxu0
    %1395 = vdwg.mxu0
    %v1396 = vadd.f32 %v1337, %v1391
    %s1397 = scalar_lea.vmem %s13, 96
    %v1398 = vld [vmem:[%s1397] sm:$0xf]
    %v1399 = vld [vmem:[%s1397 + $0x4] sm:$0x1]
    %v1400 = vrot.slane %v1164, 4
    %v1401 = vrot.slane %v1165, 3
    %v1402 = vsel %vm693, %v1401, %v1400
    %v1403 = vpack.c.b16 %v1402, %v1402
    %v1406 = vunpack.c.l.b16 %v1398
    %v1407 = vunpack.c.l.b16 %v1399
    %v1408 = vpack.c.b16 %v1407, %v1406
    %v1410 = vsel %vm701, %v1403, 0
    %v1413 = vsel %vm705, %v1408, 0
    %1415 = vmatprep.subr.bf16.mxu0 0
    %1416 = vmatpush1.bf16.msra.mxu0 0
    %1417 = vmatprep.subr.bf16.mxu0 0
    %1418 = vmatpush1.bf16.msra.mxu0 0
    %1419 = vmatprep.subr.bf16.mxu0 0
    %1420 = vmatpush1.bf16.msra.mxu0 0
    %1421 = vmatprep.subr.bf16.mxu0 0
    %1422 = vmatpush1.bf16.msra.mxu0 0
    %1423 = vmatprep.subr.bf16.mxu0 0
    %1424 = vmatpush1.bf16.msra.mxu0 0
    %1425 = vmatprep.subr.bf16.mxu0 0
    %1426 = vmatpush1.bf16.msra.mxu0 0
    %1427 = vmatprep.subr.bf16.mxu0 0
    %1428 = vmatpush1.bf16.msra.mxu0 0
    %1429 = vmatprep.subr.bf16.mxu0 0
    %1430 = vmatpush1.bf16.msra.mxu0 %v1413
    %1431 = vmatprep.subr.bf16.mxu0 0
    %1432 = vmatpush2.bf16.msra.mxu0 0
    %1433 = vmatprep.subr.bf16.mxu0 0
    %1434 = vmatpush2.bf16.msra.mxu0 0
    %1435 = vmatprep.subr.bf16.mxu0 0
    %1436 = vmatpush2.bf16.msra.mxu0 0
    %1437 = vmatprep.subr.bf16.mxu0 0
    %1438 = vmatpush2.bf16.msra.mxu0 0
    %1439 = vmatprep.subr.bf16.mxu0 0
    %1440 = vmatpush2.bf16.msra.mxu0 0
    %1441 = vmatprep.subr.bf16.mxu0 0
    %1442 = vmatpush2.bf16.msra.mxu0 0
    %1443 = vmatprep.subr.bf16.mxu0 0
    %1444 = vmatpush2.bf16.msra.mxu0 0
    %1445 = vmatprep.subr.bf16.mxu0 0
    %1446 = vmatpush2.bf16.msra.mxu0 0
    %1447 = vmatprep.mubr.bf16.mxu0 0
    %1448 = vmatmul.mubr.bf16.gmra.mxu0 %v1410
    %v1449 = vpop.f32.mrf.mxu0
    %v1450 = vadd.f32 0.0, %v1449
    %v1451 = vpop.f32.mrf.mxu0
    %v1452 = vpop.f32.mrf.mxu0
    %v1453 = vpop.f32.mrf.mxu0
    %1454 = vdwg.mxu0
    %v1455 = vadd.f32 %v1396, %v1450
    %s1456 = scalar_lea.vmem %s13, 104
    %v1457 = vld [vmem:[%s1456] sm:$0xf]
    %v1458 = vld [vmem:[%s1456 + $0x4] sm:$0x1]
    %v1459 = vrot.slane %v1164, 5
    %v1460 = vrot.slane %v1165, 4
    %v1461 = vsel %vm693, %v1460, %v1459
    %v1462 = vpack.c.b16 %v1461, %v1461
    %v1465 = vunpack.c.l.b16 %v1457
    %v1466 = vunpack.c.l.b16 %v1458
    %v1467 = vpack.c.b16 %v1466, %v1465
    %v1469 = vsel %vm701, %v1462, 0
    %v1472 = vsel %vm705, %v1467, 0
    %1474 = vmatprep.subr.bf16.mxu0 0
    %1475 = vmatpush1.bf16.msra.mxu0 0
    %1476 = vmatprep.subr.bf16.mxu0 0
    %1477 = vmatpush1.bf16.msra.mxu0 0
    %1478 = vmatprep.subr.bf16.mxu0 0
    %1479 = vmatpush1.bf16.msra.mxu0 0
    %1480 = vmatprep.subr.bf16.mxu0 0
    %1481 = vmatpush1.bf16.msra.mxu0 0
    %1482 = vmatprep.subr.bf16.mxu0 0
    %1483 = vmatpush1.bf16.msra.mxu0 0
    %1484 = vmatprep.subr.bf16.mxu0 0
    %1485 = vmatpush1.bf16.msra.mxu0 0
    %1486 = vmatprep.subr.bf16.mxu0 0
    %1487 = vmatpush1.bf16.msra.mxu0 0
    %1488 = vmatprep.subr.bf16.mxu0 0
    %1489 = vmatpush1.bf16.msra.mxu0 %v1472
    %1490 = vmatprep.subr.bf16.mxu0 0
    %1491 = vmatpush2.bf16.msra.mxu0 0
    %1492 = vmatprep.subr.bf16.mxu0 0
    %1493 = vmatpush2.bf16.msra.mxu0 0
    %1494 = vmatprep.subr.bf16.mxu0 0
    %1495 = vmatpush2.bf16.msra.mxu0 0
    %1496 = vmatprep.subr.bf16.mxu0 0
    %1497 = vmatpush2.bf16.msra.mxu0 0
    %1498 = vmatprep.subr.bf16.mxu0 0
    %1499 = vmatpush2.bf16.msra.mxu0 0
    %1500 = vmatprep.subr.bf16.mxu0 0
    %1501 = vmatpush2.bf16.msra.mxu0 0
    %1502 = vmatprep.subr.bf16.mxu0 0
    %1503 = vmatpush2.bf16.msra.mxu0 0
    %1504 = vmatprep.subr.bf16.mxu0 0
    %1505 = vmatpush2.bf16.msra.mxu0 0
    %1506 = vmatprep.mubr.bf16.mxu0 0
    %1507 = vmatmul.mubr.bf16.gmra.mxu0 %v1469
    %v1508 = vpop.f32.mrf.mxu0
    %v1509 = vadd.f32 0.0, %v1508
    %v1510 = vpop.f32.mrf.mxu0
    %v1511 = vpop.f32.mrf.mxu0
    %v1512 = vpop.f32.mrf.mxu0
    %1513 = vdwg.mxu0
    %v1514 = vadd.f32 %v1455, %v1509
    %s1515 = scalar_lea.vmem %s13, 112
    %v1516 = vld [vmem:[%s1515] sm:$0xf]
    %v1517 = vld [vmem:[%s1515 + $0x4] sm:$0x1]
    %v1518 = vrot.slane %v1164, 6
    %v1519 = vrot.slane %v1165, 5
    %v1520 = vsel %vm693, %v1519, %v1518
    %v1521 = vpack.c.b16 %v1520, %v1520
    %v1524 = vunpack.c.l.b16 %v1516
    %v1525 = vunpack.c.l.b16 %v1517
    %v1526 = vpack.c.b16 %v1525, %v1524
    %v1528 = vsel %vm701, %v1521, 0
    %v1531 = vsel %vm705, %v1526, 0
    %1533 = vmatprep.subr.bf16.mxu0 0
    %1534 = vmatpush1.bf16.msra.mxu0 0
    %1535 = vmatprep.subr.bf16.mxu0 0
    %1536 = vmatpush1.bf16.msra.mxu0 0
    %1537 = vmatprep.subr.bf16.mxu0 0
    %1538 = vmatpush1.bf16.msra.mxu0 0
    %1539 = vmatprep.subr.bf16.mxu0 0
    %1540 = vmatpush1.bf16.msra.mxu0 0
    %1541 = vmatprep.subr.bf16.mxu0 0
    %1542 = vmatpush1.bf16.msra.mxu0 0
    %1543 = vmatprep.subr.bf16.mxu0 0
    %1544 = vmatpush1.bf16.msra.mxu0 0
    %1545 = vmatprep.subr.bf16.mxu0 0
    %1546 = vmatpush1.bf16.msra.mxu0 0
    %1547 = vmatprep.subr.bf16.mxu0 0
    %1548 = vmatpush1.bf16.msra.mxu0 %v1531
    %1549 = vmatprep.subr.bf16.mxu0 0
    %1550 = vmatpush2.bf16.msra.mxu0 0
    %1551 = vmatprep.subr.bf16.mxu0 0
    %1552 = vmatpush2.bf16.msra.mxu0 0
    %1553 = vmatprep.subr.bf16.mxu0 0
    %1554 = vmatpush2.bf16.msra.mxu0 0
    %1555 = vmatprep.subr.bf16.mxu0 0
    %1556 = vmatpush2.bf16.msra.mxu0 0
    %1557 = vmatprep.subr.bf16.mxu0 0
    %1558 = vmatpush2.bf16.msra.mxu0 0
    %1559 = vmatprep.subr.bf16.mxu0 0
    %1560 = vmatpush2.bf16.msra.mxu0 0
    %1561 = vmatprep.subr.bf16.mxu0 0
    %1562 = vmatpush2.bf16.msra.mxu0 0
    %1563 = vmatprep.subr.bf16.mxu0 0
    %1564 = vmatpush2.bf16.msra.mxu0 0
    %1565 = vmatprep.mubr.bf16.mxu0 0
    %1566 = vmatmul.mubr.bf16.gmra.mxu0 %v1528
    %v1567 = vpop.f32.mrf.mxu0
    %v1568 = vadd.f32 0.0, %v1567
    %v1569 = vpop.f32.mrf.mxu0
    %v1570 = vpop.f32.mrf.mxu0
    %v1571 = vpop.f32.mrf.mxu0
    %1572 = vdwg.mxu0
    %v1573 = vadd.f32 %v1514, %v1568
    %s1574 = scalar_lea.vmem %s13, 120
    %v1575 = vld [vmem:[%s1574] sm:$0xf]
    %v1576 = vld [vmem:[%s1574 + $0x4] sm:$0x1]
    %v1577 = vrot.slane %v1164, 7
    %v1578 = vrot.slane %v1165, 6
    %v1579 = vsel %vm693, %v1578, %v1577
    %v1580 = vpack.c.b16 %v1579, %v1579
    %v1583 = vunpack.c.l.b16 %v1575
    %v1584 = vunpack.c.l.b16 %v1576
    %v1585 = vpack.c.b16 %v1584, %v1583
    %v1587 = vsel %vm701, %v1580, 0
    %v1590 = vsel %vm705, %v1585, 0
    %1592 = vmatprep.subr.bf16.mxu0 0
    %1593 = vmatpush1.bf16.msra.mxu0 0
    %1594 = vmatprep.subr.bf16.mxu0 0
    %1595 = vmatpush1.bf16.msra.mxu0 0
    %1596 = vmatprep.subr.bf16.mxu0 0
    %1597 = vmatpush1.bf16.msra.mxu0 0
    %1598 = vmatprep.subr.bf16.mxu0 0
    %1599 = vmatpush1.bf16.msra.mxu0 0
    %1600 = vmatprep.subr.bf16.mxu0 0
    %1601 = vmatpush1.bf16.msra.mxu0 0
    %1602 = vmatprep.subr.bf16.mxu0 0
    %1603 = vmatpush1.bf16.msra.mxu0 0
    %1604 = vmatprep.subr.bf16.mxu0 0
    %1605 = vmatpush1.bf16.msra.mxu0 0
    %1606 = vmatprep.subr.bf16.mxu0 0
    %1607 = vmatpush1.bf16.msra.mxu0 %v1590
    %1608 = vmatprep.subr.bf16.mxu0 0
    %1609 = vmatpush2.bf16.msra.mxu0 0
    %1610 = vmatprep.subr.bf16.mxu0 0
    %1611 = vmatpush2.bf16.msra.mxu0 0
    %1612 = vmatprep.subr.bf16.mxu0 0
    %1613 = vmatpush2.bf16.msra.mxu0 0
    %1614 = vmatprep.subr.bf16.mxu0 0
    %1615 = vmatpush2.bf16.msra.mxu0 0
    %1616 = vmatprep.subr.bf16.mxu0 0
    %1617 = vmatpush2.bf16.msra.mxu0 0
    %1618 = vmatprep.subr.bf16.mxu0 0
    %1619 = vmatpush2.bf16.msra.mxu0 0
    %1620 = vmatprep.subr.bf16.mxu0 0
    %1621 = vmatpush2.bf16.msra.mxu0 0
    %1622 = vmatprep.subr.bf16.mxu0 0
    %1623 = vmatpush2.bf16.msra.mxu0 0
    %1624 = vmatprep.mubr.bf16.mxu0 0
    %1625 = vmatmul.mubr.bf16.gmra.mxu0 %v1587
    %v1626 = vpop.f32.mrf.mxu0
    %v1627 = vadd.f32 0.0, %v1626
    %v1628 = vpop.f32.mrf.mxu0
    %v1629 = vpop.f32.mrf.mxu0
    %v1630 = vpop.f32.mrf.mxu0
    %1631 = vdwg.mxu0
    %v1632 = vadd.f32 %v1573, %v1627
    %v1633 = vld [vmem:[%s14] sm:$0x1]
    %v1635 = vlaneseq
    %v1636 = vshrl.u32 %v1635, 7
    %v1637 = vsub.s32 0, %v1636
    %v1638 = vrot.slane %v1633, %v1637
    %v1640 = vadd.f32 %v1632, %v1638
    %v1641 = vld [vmem:[%s15] sm:$0xf]
    %v1642 = vpack.c.bf16 %v1640, %v1640
    %v1644 = vsel %vm99, %v1642, 0
    %v1647 = vsel %vm305, %v1641, 0
    %1649 = vmatprep.subr.bf16.mxu0 0
    %1650 = vmatpush1.bf16.msra.mxu0 0
    %1651 = vmatprep.subr.bf16.mxu0 0
    %1652 = vmatpush1.bf16.msra.mxu0 0
    %1653 = vmatprep.subr.bf16.mxu0 0
    %1654 = vmatpush1.bf16.msra.mxu0 0
    %1655 = vmatprep.subr.bf16.mxu0 0
    %1656 = vmatpush1.bf16.msra.mxu0 0
    %1657 = vmatprep.subr.bf16.mxu0 0
    %1658 = vmatpush1.bf16.msra.mxu0 0
    %1659 = vmatprep.subr.bf16.mxu0 0
    %1660 = vmatpush1.bf16.msra.mxu0 0
    %1661 = vmatprep.subr.bf16.mxu0 0
    %1662 = vmatpush1.bf16.msra.mxu0 0
    %1663 = vmatprep.subr.bf16.mxu0 0
    %1664 = vmatpush1.bf16.msra.mxu0 %v1647
    %1665 = vmatprep.subr.bf16.mxu0 0
    %1666 = vmatpush2.bf16.msra.mxu0 0
    %1667 = vmatprep.subr.bf16.mxu0 0
    %1668 = vmatpush2.bf16.msra.mxu0 0
    %1669 = vmatprep.subr.bf16.mxu0 0
    %1670 = vmatpush2.bf16.msra.mxu0 0
    %1671 = vmatprep.subr.bf16.mxu0 0
    %1672 = vmatpush2.bf16.msra.mxu0 0
    %1673 = vmatprep.subr.bf16.mxu0 0
    %1674 = vmatpush2.bf16.msra.mxu0 0
    %1675 = vmatprep.subr.bf16.mxu0 0
    %1676 = vmatpush2.bf16.msra.mxu0 0
    %1677 = vmatprep.subr.bf16.mxu0 0
    %1678 = vmatpush2.bf16.msra.mxu0 0
    %1679 = vmatprep.subr.bf16.mxu0 0
    %1680 = vmatpush2.bf16.msra.mxu0 0
    %1681 = vmatprep.mubr.bf16.mxu0 0
    %1682 = vmatmul.mubr.bf16.gmra.mxu0 %v1644
    %v1683 = vpop.f32.mrf.mxu0
    %v1684 = vadd.f32 0.0, %v1683
    %v1685 = vpop.f32.mrf.mxu0
    %v1686 = vpop.f32.mrf.mxu0
    %v1687 = vpop.f32.mrf.mxu0
    %1688 = vdwg.mxu0
    %v1689 = vld [vmem:[%s16] sm:$0x1]
    %v1690 = vld [vmem:[%s17] sm:$0x1]
    %vm1691 = vcmask 9216
    %v1692 = vsel %vm1691, %v1684, 0.0
    %v1693 = vrot.slane %v1692, 4
    %v1694 = vadd.f32 %v1692, %v1693
    %v1695 = vrot.slane %v1694, 2
    %v1696 = vadd.f32 %v1694, %v1695
    %v1697 = vrot.slane %v1696, 1
    %v1698 = vadd.f32 %v1696, %v1697
    %v1699 = vmul.f32 %v1698, %v198
    %v1700 = vsub.f32 %v1684, %v1699
    %v1701 = vmul.f32 %v1700, %v1700
    %v1702 = vsel %vm1691, %v1701, 0.0
    %v1703 = vrot.slane %v1702, 4
    %v1704 = vadd.f32 %v1702, %v1703
    %v1705 = vrot.slane %v1704, 2
    %v1706 = vadd.f32 %v1704, %v1705
    %v1707 = vrot.slane %v1706, 1
    %v1708 = vadd.f32 %v1706, %v1707
    %v1709 = vmul.f32 %v1708, %v198
    %v1710 = vadd.f32 %v1709, 1e-05
    %v1711 = vrsqrt.pop %v1710
    %v1712 = vmul.f32 %v1700, %v1711
    %v1714 = vlaneseq
    %v1715 = vshrl.u32 %v1714, 7
    %v1716 = vsub.s32 0, %v1715
    %v1717 = vrot.slane %v1689, %v1716
    %v1719 = vmul.f32 %v1712, %v1717
    %v1721 = vlaneseq
    %v1722 = vshrl.u32 %v1721, 7
    %v1723 = vsub.s32 0, %v1722
    %v1724 = vrot.slane %v1690, %v1723
    %v1726 = vadd.f32 %v1719, %v1724
    %v1727 = vmax.f32 %v1726, 0.0
    %v1728 = vld [vmem:[%s18] sm:$0x1]
    %v1729 = vpack.c.bf16 %v1727, %v1727
    %v1730 = vld [vmem:[%s19] sm:$0x1]
    %v1732 = vlaneseq
    %v1733 = vshrl.u32 %v1732, 7
    %v1734 = vsub.s32 0, %v1733
    %v1735 = vrot.slane %v1730, %v1734
    %vm1737 = vcmask 15360
    %v1739 = vsel %vm1737, %v1729, 0
    %vm1741 = vcmask 1040384
    %v1743 = vsel %vm1741, %v1728, 0
    %1745 = vmatprep.subr.bf16.mxu0 0
    %1746 = vmatpush1.bf16.msra.mxu0 0
    %1747 = vmatprep.subr.bf16.mxu0 0
    %1748 = vmatpush1.bf16.msra.mxu0 0
    %1749 = vmatprep.subr.bf16.mxu0 0
    %1750 = vmatpush1.bf16.msra.mxu0 0
    %1751 = vmatprep.subr.bf16.mxu0 0
    %1752 = vmatpush1.bf16.msra.mxu0 0
    %1753 = vmatprep.subr.bf16.mxu0 0
    %1754 = vmatpush1.bf16.msra.mxu0 0
    %1755 = vmatprep.subr.bf16.mxu0 0
    %1756 = vmatpush1.bf16.msra.mxu0 0
    %1757 = vmatprep.subr.bf16.mxu0 0
    %1758 = vmatpush1.bf16.msra.mxu0 0
    %1759 = vmatprep.subr.bf16.mxu0 0
    %1760 = vmatpush1.bf16.msra.mxu0 %v1743
    %1761 = vmatprep.subr.bf16.mxu0 0
    %1762 = vmatpush2.bf16.msra.mxu0 0
    %1763 = vmatprep.subr.bf16.mxu0 0
    %1764 = vmatpush2.bf16.msra.mxu0 0
    %1765 = vmatprep.subr.bf16.mxu0 0
    %1766 = vmatpush2.bf16.msra.mxu0 0
    %1767 = vmatprep.subr.bf16.mxu0 0
    %1768 = vmatpush2.bf16.msra.mxu0 0
    %1769 = vmatprep.subr.bf16.mxu0 0
    %1770 = vmatpush2.bf16.msra.mxu0 0
    %1771 = vmatprep.subr.bf16.mxu0 0
    %1772 = vmatpush2.bf16.msra.mxu0 0
    %1773 = vmatprep.subr.bf16.mxu0 0
    %1774 = vmatpush2.bf16.msra.mxu0 0
    %1775 = vmatprep.subr.bf16.mxu0 0
    %1776 = vmatpush2.bf16.msra.mxu0 0
    %1777 = vmatprep.mubr.bf16.mxu0 0
    %1778 = vmatmul.mubr.bf16.gmra.mxu0 %v1739
    %v1779 = vpop.f32.mrf.mxu0
    %v1780 = vadd.f32 %v1735, %v1779
    %v1781 = vpop.f32.mrf.mxu0
    %v1782 = vpop.f32.mrf.mxu0
    %v1783 = vpop.f32.mrf.mxu0
    %1784 = vdwg.mxu0
    %v1785 = vmul.f32 %v1640, %v1640
    %vm1786 = vcmask 58368
    %v1787 = vsel %vm1786, %v1785, 0.0
    %1788 = vadd.xlane.f32.xlu0 %v1787
    %v1789 = vpop.xlane.xlu0 %1788
    %v1790 = vmax.f32 %v1789, 1e-24
    %v1791 = vrsqrt.pop %v1790
    %v1792 = vmul.f32 %v1640, %v1791
    %1793 = vst.msk [vmem:[#allocation3] sm:$0x3] %vm1786, %v1792
    %v1794 = vmul.f32 %v1780, %v1780
    %vm1795 = vcmask 123904
    %v1796 = vsel %vm1795, %v1794, 0.0
    %1797 = vadd.xlane.f32.xlu0 %v1796
    %v1798 = vpop.xlane.xlu0 %1797
    %v1799 = vmax.f32 %v1798, 1e-24
    %v1800 = vrsqrt.pop %v1799
    %v1801 = vmul.f32 %v1780, %v1800
    %1802 = vst.msk [vmem:[#allocation5] sm:$0x3] %vm1795, %v1801
    // Predicated region
    $region82: #{tpu_custom_call.1} parent=1 // pred_check
      _
    $region83: #{tpu_custom_call.1} parent=1 // pred_check_branch
      %1804 = sbr.rel (0) target = $region85
    $region84: #{tpu_custom_call.1} parent=1 // pred_region
      %s1806 = ssub.s32 32, 32
      %1807 = vsyncadd [#allocation4], %s1806
      %s1809 = sshll.u32 [#allocation3], 4
      %s1810 = int_to_ptr.vmem [resolvable:$true] %s1809
      %1812 = dma.vmem_to_hbm [thread:$0]  %s1810, 32, %s20, [#allocation4]
    $region85: #{tpu_custom_call.1} parent=1 // pred_fallthru
      _
    // Predicated region
    $region86: #{tpu_custom_call.1} parent=1 // pred_check
      _
    $region87: #{tpu_custom_call.1} parent=1 // pred_check_branch
      %1814 = sbr.rel (0) target = $region89
    $region88: #{tpu_custom_call.1} parent=1 // pred_region
      %s1816 = ssub.s32 32, 32
      %1817 = vsyncadd [#allocation6], %s1816
      %s1819 = sshll.u32 [#allocation5], 4
      %s1820 = int_to_ptr.vmem [resolvable:$true] %s1819
      %1822 = dma.vmem_to_hbm [thread:$0]  %s1820, 32, %s21, [#allocation6]
    $region89: #{tpu_custom_call.1} parent=1 // pred_fallthru
      _
    // Predicated region
    $region90: #{tpu_custom_call.1} parent=1 // pred_check
      _
    $region91: #{tpu_custom_call.1} parent=1 // pred_check_branch
      %1824 = sbr.rel (0) target = $region93
    $region92: #{tpu_custom_call.1} parent=1 // pred_region
      %1825 = dma.done [#allocation4], 32
    $region93: #{tpu_custom_call.1} parent=1 // pred_fallthru
      _
    // Predicated region
    $region94: #{tpu_custom_call.1} parent=1 // pred_check
      _
    $region95: #{tpu_custom_call.1} parent=1 // pred_check_branch
      %1827 = sbr.rel (0) target = $region97
    $region96: #{tpu_custom_call.1} parent=1 // pred_region
      %1828 = dma.done [#allocation6], 32
    $region97: #{tpu_custom_call.1} parent=1 // pred_fallthru
      _
    %1829 = vsyncpa [#allocation4], 1
    %1830 = vsyncpa [#allocation6], 1

</llo_original>
